<compile_context>
chip_gen: v6e
topology: v6e:2x2x1
jax: 0.10.0
libtpu: 0.0.40
codegen_flags: <defaults>
</compile_context>

<pallas_src>
import math
import functools

import jax
import jax.numpy as jnp
from jax.experimental import pallas as pl
from jax.experimental.pallas import tpu as pltpu


# ----------------------------- helpers ----------------------------------------

def _layer_norm(z, g, b, eps):
    mu = jnp.mean(z, axis=-1, keepdims=True)
    zc = z - mu                                     # reuse centered tensor
    var = jnp.mean(zc * zc, axis=-1, keepdims=True)
    return zc * jax.lax.rsqrt(var + eps) * g + b    # rsqrt -> EUP slot


# ----------------------------- kernel ------------------------------------------

def encoder_stack_kernel(x0_ref,
                         ln1g_ref, ln1b_ref, wqkv_ref, bqkv_ref, wo_ref, bo_ref,
                         ln2g_ref, ln2b_ref, w1_ref, b1_ref, w2_ref, b2_ref,
                         o_ref, *, Bt, S, H, NH, Dh):
    l = pl.program_id(1)          # layer index (inner, "arbitrary")
    R = Bt * S                    # rows in this batch tile

    # carry init: embedding LN already applied in the wrapper
    @pl.when(l == 0)
    def _():
        o_ref[...] = x0_ref[...]

    x = o_ref[...]                                  # (R, H) f32 residual stream

    # ---------------- multi-head self attention (pre-LN) -----------------------
    h1 = _layer_norm(x, ln1g_ref[0], ln1b_ref[0], 1e-5)
    # fused QKV projection; 1/sqrt(Dh) is pre-folded into the Q columns / bias
    qkv = jnp.dot(h1.astype(jnp.bfloat16), wqkv_ref[0],
                  preferred_element_type=jnp.float32) + bqkv_ref[0]      # (R, 3H)
    wo = wo_ref[0]                                                       # (H, H) bf16

    attn = jnp.zeros((R, H), jnp.float32)
    for hd in range(NH):
        # static per-head lane slices (no concats / relayout copies)
        q = qkv[:, hd * Dh:(hd + 1) * Dh].reshape(Bt, S, Dh)
        k = qkv[:, H + hd * Dh:H + (hd + 1) * Dh].reshape(Bt, S, Dh)
        v = qkv[:, 2 * H + hd * Dh:2 * H + (hd + 1) * Dh].reshape(Bt, S, Dh)

        s = jnp.einsum('bqd,bkd->bqk',
                       q.astype(jnp.bfloat16), k.astype(jnp.bfloat16),
                       preferred_element_type=jnp.float32)               # (Bt, S, S)
        s = s - jnp.max(s, axis=-1, keepdims=True)
        p = jnp.exp(s)
        p = p * pl.reciprocal(jnp.sum(p, axis=-1, keepdims=True), approx=False)
        ctx = jnp.einsum('bqk,bkd->bqd',
                         p.astype(jnp.bfloat16), v.astype(jnp.bfloat16),
                         preferred_element_type=jnp.float32)             # (Bt, S, Dh)

        # head-concat folded into the output projection: sum_h ctx_h @ Wo[rows of h]
        attn = attn + jnp.dot(ctx.reshape(R, Dh).astype(jnp.bfloat16),
                              wo[hd * Dh:(hd + 1) * Dh, :],
                              preferred_element_type=jnp.float32)
    x = x + attn + bo_ref[0]

    # ---------------------- feed forward (pre-LN) ------------------------------
    h2 = _layer_norm(x, ln2g_ref[0], ln2b_ref[0], 1e-5)
    f = jnp.dot(h2.astype(jnp.bfloat16), w1_ref[0],
                preferred_element_type=jnp.float32) + b1_ref[0]
    # exact (erf-based) GELU, matching nn.GELU() default, in f32
    f = 0.5 * f * (1.0 + jax.lax.erf(f * (1.0 / math.sqrt(2.0))))
    f = jnp.dot(f.astype(jnp.bfloat16), w2_ref[0],
                preferred_element_type=jnp.float32) + b2_ref[0]
    o_ref[...] = x + f


# ----------------------------- wrapper ------------------------------------------

_STACK_KEYS = ["ln1_g", "ln1_b", "wqkv", "bqkv", "wo", "bo",
               "ln2_g", "ln2_b", "w1", "b1", "w2", "b2"]


def _pick_batch_tile(B, S, requested):
    # smallest divisor of B >= requested whose row count is sublane-aligned
    for bt in range(max(1, requested), B + 1):
        if B % bt == 0 and (bt * S) % 8 == 0:
            return bt
    return B          # full batch block always satisfies the (8,128) rule


def _vmem_limit_bytes(R, Bt, S, H, I_dim, stacked):
    carry = R * H * 4                          # resident f32 carry (output block)
    x0 = R * H * 4                             # resident f32 init block
    w = sum(math.prod(t.shape[1:]) * t.dtype.itemsize for t in stacked)
    inter = Bt * S * S * 4 + R * max(3 * H, I_dim) * 4   # scores + widest activation
    est = 2 * (carry + x0 + w) + 4 * inter + (8 << 20)   # 2x = double buffering
    return int(min(est, 64 << 20))             # stay within v7x physical VMEM


def transformer_encoder_forward(input_ids, params, *, batch_tile=1):
    B, S = input_ids.shape
    H = params["emb_table"].shape[1]
    NH = params["num_heads"]
    Dh = H // NH
    L = params["wqkv"].shape[0]
    I_dim = params["w1"].shape[2]

    bt = _pick_batch_tile(B, S, batch_tile)
    NB = B // bt
    R = bt * S

    # glue in JAX: embedding gather, batch-indexed PE add, and embedding LayerNorm
    tok = params["emb_table"][input_ids]                         # (B, S, H)
    x = tok + params["pe"][:B][:, None, :]                       # pe[b] per batch row
    x0 = _layer_norm(x, params["emb_ln_g"], params["emb_ln_b"], 1e-12)
    x0 = x0.reshape(B * S, H).astype(jnp.float32)

    stacked = [params[k] for k in _STACK_KEYS]                   # all (L, ., .) arrays
    kernel = functools.partial(encoder_stack_kernel, Bt=bt, S=S, H=H, NH=NH, Dh=Dh)

    out2d = pl.pallas_call(
        kernel,
        out_shape=jax.ShapeDtypeStruct((B * S, H), jnp.float32),
        grid=(NB, L),
        in_specs=(
            [pl.BlockSpec((R, H), lambda nb, l: (nb, 0))]        # x0 (init per tile)
            + [pl.BlockSpec((1,) + tuple(w.shape[1:]), lambda nb, l: (l, 0, 0))
               for w in stacked]                                  # per-layer weights
        ),
        out_specs=pl.BlockSpec((R, H), lambda nb, l: (nb, 0)),    # VMEM-resident carry
        compiler_params=pltpu.CompilerParams(
            dimension_semantics=("parallel", "arbitrary"),
            vmem_limit_bytes=_vmem_limit_bytes(R, bt, S, H, I_dim, stacked)),
    )(x0, *stacked)

    return out2d.reshape(B, S, H)


# ----------------------------- parameter init ------------------------------------

def make_positional_encoding(max_len, d_model):
    position = jnp.arange(max_len, dtype=jnp.float32)[:, None]
    div_term = jnp.exp(jnp.arange(0, d_model, 2, dtype=jnp.float32)
                       * (-math.log(10000.0) / d_model))
    pe = jnp.zeros((max_len, d_model), jnp.float32)
    pe = pe.at[:, 0::2].set(jnp.sin(position * div_term))
    pe = pe.at[:, 1::2].set(jnp.cos(position * div_term))
    return pe                                                     # (max_len, d_model)


def make_params(key, vocab_size, H, I, NH, num_layers, max_len):
    Dh = H // NH
    q_scale = 1.0 / math.sqrt(Dh)

    def nxt():
        nonlocal key
        key, sub = jax.random.split(key)
        return sub

    def lin(in_f, out_f):
        bound = 1.0 / math.sqrt(in_f)
        w = jax.random.uniform(nxt(), (in_f, out_f), jnp.float32, -bound, bound)
        b = jax.random.uniform(nxt(), (1, out_f), jnp.float32, -bound, bound)
        return w, b

    cols = {k: [] for k in _STACK_KEYS}
    for _ in range(num_layers):
        # per-head Linear(H, Dh) blocks fused head-blocked into (H, H) per Q/K/V,
        # then (H, 3H); head h occupies columns [h*Dh:(h+1)*Dh] of each block and
        # rows [h*Dh:(h+1)*Dh] of wo (kernel relies on this ordering).
        wq, bq = lin(H, H)
        wk, bk = lin(H, H)
        wv, bv = lin(H, H)
        # fold the 1/sqrt(Dh) attention scale into the Q projection (weight + bias)
        cols["wqkv"].append(jnp.concatenate([wq * q_scale, wk, wv], axis=1))  # (H, 3H)
        cols["bqkv"].append(jnp.concatenate([bq * q_scale, bk, bv], axis=1))  # (1, 3H)
        wo, bo = lin(H, H)
        w1, b1 = lin(H, I)
        w2, b2 = lin(I, H)
        cols["wo"].append(wo); cols["bo"].append(bo)
        cols["w1"].append(w1); cols["b1"].append(b1)
        cols["w2"].append(w2); cols["b2"].append(b2)
        cols["ln1_g"].append(jnp.ones((1, H), jnp.float32))
        cols["ln1_b"].append(jnp.zeros((1, H), jnp.float32))
        cols["ln2_g"].append(jnp.ones((1, H), jnp.float32))
        cols["ln2_b"].append(jnp.zeros((1, H), jnp.float32))

    params = {
        "emb_table": 0.02 * jax.random.normal(nxt(), (vocab_size, H), jnp.float32),
        "pe": make_positional_encoding(max_len, H),
        "emb_ln_g": jnp.ones((1, H), jnp.float32),
        "emb_ln_b": jnp.zeros((1, H), jnp.float32),
        "num_heads": NH,
    }
    for k in _STACK_KEYS:
        stacked = jnp.stack(cols[k])                              # (L, ., .)
        if k in ("wqkv", "wo", "w1", "w2"):                       # matmul weights -> bf16
            stacked = stacked.astype(jnp.bfloat16)
        params[k] = stacked
    return params


# ----------------------------- main -----------------------------------------------

if __name__ == "__main__":
    B, S = 2, 8
    H, NH = 32, 4
    I = 64
    VOCAB = 50
    NUM_LAYERS = 2
    MAX_LEN = 16

    key = jax.random.PRNGKey(0)
    key, pkey, ikey = jax.random.split(key, 3)
    params = make_params(pkey, VOCAB, H, I, NH, NUM_LAYERS, MAX_LEN)
    input_ids = jax.random.randint(ikey, (B, S), 0, VOCAB, dtype=jnp.int32)

    out = transformer_encoder_forward(input_ids, params, batch_tile=1)
    jax.block_until_ready(out)
    assert out.shape == (B, S, H)
    assert bool(jnp.all(jnp.isfinite(out)))
    print("KERNEL_OK")
</pallas_src>

<mosaic_0001>
module attributes {stable_mosaic.version = 11 : i64} {
  func.func @encoder_stack_kernel(%arg0: i32, %arg1: i32, %arg2: memref<8x32xf32, #tpu.memory_space<vmem>>, %arg3: memref<1x1x32xf32, #tpu.memory_space<vmem>>, %arg4: memref<1x1x32xf32, #tpu.memory_space<vmem>>, %arg5: memref<1x32x96xbf16, #tpu.memory_space<vmem>>, %arg6: memref<1x1x96xf32, #tpu.memory_space<vmem>>, %arg7: memref<1x32x32xbf16, #tpu.memory_space<vmem>>, %arg8: memref<1x1x32xf32, #tpu.memory_space<vmem>>, %arg9: memref<1x1x32xf32, #tpu.memory_space<vmem>>, %arg10: memref<1x1x32xf32, #tpu.memory_space<vmem>>, %arg11: memref<1x32x64xbf16, #tpu.memory_space<vmem>>, %arg12: memref<1x1x64xf32, #tpu.memory_space<vmem>>, %arg13: memref<1x64x32xbf16, #tpu.memory_space<vmem>>, %arg14: memref<1x1x32xf32, #tpu.memory_space<vmem>>, %arg15: memref<8x32xf32, #tpu.memory_space<vmem>>) attributes {dimension_semantics = [#tpu.dimension_semantics<parallel>, #tpu.dimension_semantics<arbitrary>], iteration_bounds = array<i64: 2, 2>, scalar_prefetch = 0 : i64, scratch_operands = 0 : i64, tpu.core_type = #tpu.core_type<tc>, window_params = [{transform_indices = @transform_0, window_bounds = array<i64: 8, 32>}, {transform_indices = @transform_1, window_bounds = array<i64: 1, 1, 32>}, {transform_indices = @transform_2, window_bounds = array<i64: 1, 1, 32>}, {transform_indices = @transform_3, window_bounds = array<i64: 1, 32, 96>}, {transform_indices = @transform_4, window_bounds = array<i64: 1, 1, 96>}, {transform_indices = @transform_5, window_bounds = array<i64: 1, 32, 32>}, {transform_indices = @transform_6, window_bounds = array<i64: 1, 1, 32>}, {transform_indices = @transform_7, window_bounds = array<i64: 1, 1, 32>}, {transform_indices = @transform_8, window_bounds = array<i64: 1, 1, 32>}, {transform_indices = @transform_9, window_bounds = array<i64: 1, 32, 64>}, {transform_indices = @transform_10, window_bounds = array<i64: 1, 1, 64>}, {transform_indices = @transform_11, window_bounds = array<i64: 1, 64, 32>}, {transform_indices = @transform_12, window_bounds = array<i64: 1, 1, 32>}, {transform_indices = @transform_13, window_bounds = array<i64: 8, 32>}]} {
    %c0_i32 = arith.constant 0 : i32
    %0 = arith.cmpi eq, %arg1, %c0_i32 : i32
    %1 = arith.extui %0 : i1 to i32
    %c0_i32_0 = arith.constant 0 : i32
    %2 = arith.cmpi ne, %1, %c0_i32_0 : i32
    scf.if %2 {
      %c0_76 = arith.constant 0 : index
      %c0_77 = arith.constant 0 : index
      %202 = vector.load %arg2[%c0_76, %c0_77] : memref<8x32xf32, #tpu.memory_space<vmem>>, vector<8x32xf32>
      %c0_78 = arith.constant 0 : index
      %c0_79 = arith.constant 0 : index
      %203 = vector.load %arg15[%c0_78, %c0_79] : memref<8x32xf32, #tpu.memory_space<vmem>>, vector<8x32xf32>
      tpu.vector_store %arg15[%c0_78, %c0_79], %202 {strides = array<i32>} : memref<8x32xf32, #tpu.memory_space<vmem>>, vector<8x32xf32>,
    } else {
    }
    %c0 = arith.constant 0 : index
    %c0_1 = arith.constant 0 : index
    %3 = vector.load %arg15[%c0, %c0_1] : memref<8x32xf32, #tpu.memory_space<vmem>>, vector<8x32xf32>
    %c0_2 = arith.constant 0 : index
    %c0_3 = arith.constant 0 : index
    %c0_4 = arith.constant 0 : index
    %4 = vector.load %arg3[%c0_2, %c0_3, %c0_4] : memref<1x1x32xf32, #tpu.memory_space<vmem>>, vector<1x1x32xf32>
    %5 = vector.shape_cast %4 : vector<1x1x32xf32> to vector<1x32xf32>
    %c0_5 = arith.constant 0 : index
    %c0_6 = arith.constant 0 : index
    %c0_7 = arith.constant 0 : index
    %6 = vector.load %arg4[%c0_5, %c0_6, %c0_7] : memref<1x1x32xf32, #tpu.memory_space<vmem>>, vector<1x1x32xf32>
    %7 = vector.shape_cast %6 : vector<1x1x32xf32> to vector<1x32xf32>
    %cst = arith.constant dense<0.000000e+00> : vector<8xf32>
    %8 = vector.multi_reduction <add>, %3, %cst [1] : vector<8x32xf32> to vector<8xf32>
    %9 = vector.shape_cast %8 : vector<8xf32> to vector<8x1xf32>
    %cst_8 = arith.constant 3.200000e+01 : f32
    %10 = vector.broadcast %cst_8 : f32 to vector<8x1xf32>
    %11 = arith.divf %9, %10 : vector<8x1xf32>
    %12 = vector.broadcast %11 : vector<8x1xf32> to vector<8x32xf32>
    %13 = arith.subf %3, %12 : vector<8x32xf32>
    %14 = arith.mulf %13, %13 : vector<8x32xf32>
    %cst_9 = arith.constant dense<0.000000e+00> : vector<8xf32>
    %15 = vector.multi_reduction <add>, %14, %cst_9 [1] : vector<8x32xf32> to vector<8xf32>
    %16 = vector.shape_cast %15 : vector<8xf32> to vector<8x1xf32>
    %cst_10 = arith.constant 3.200000e+01 : f32
    %17 = vector.broadcast %cst_10 : f32 to vector<8x1xf32>
    %18 = arith.divf %16, %17 : vector<8x1xf32>
    %cst_11 = arith.constant 9.99999974E-6 : f32
    %19 = vector.broadcast %cst_11 : f32 to vector<8x1xf32>
    %20 = arith.addf %18, %19 : vector<8x1xf32>
    %21 = math.rsqrt %20 : vector<8x1xf32>
    %22 = vector.broadcast %21 : vector<8x1xf32> to vector<8x32xf32>
    %23 = arith.mulf %13, %22 : vector<8x32xf32>
    %24 = vector.broadcast %5 : vector<1x32xf32> to vector<8x32xf32>
    %25 = arith.mulf %23, %24 : vector<8x32xf32>
    %26 = vector.broadcast %7 : vector<1x32xf32> to vector<8x32xf32>
    %27 = arith.addf %25, %26 : vector<8x32xf32>
    %28 = arith.truncf %27 : vector<8x32xf32> to vector<8x32xbf16>
    %c0_12 = arith.constant 0 : index
    %c0_13 = arith.constant 0 : index
    %c0_14 = arith.constant 0 : index
    %29 = vector.load %arg5[%c0_12, %c0_13, %c0_14] : memref<1x32x96xbf16, #tpu.memory_space<vmem>>, vector<1x32x96xbf16>
    %30 = vector.shape_cast %29 : vector<1x32x96xbf16> to vector<32x96xbf16>
    %cst_15 = arith.constant dense<0.000000e+00> : vector<8x96xf32>
    %31 = tpu.matmul %28, %30, %cst_15 {dimension_numbers = #tpu.dot_dimension_numbers<[1], [0], [0], [1], [0, 0, 1, 1], [], []>} : vector<8x32xbf16>, vector<32x96xbf16>, vector<8x96xf32> -> vector<8x96xf32>
    %c0_16 = arith.constant 0 : index
    %c0_17 = arith.constant 0 : index
    %c0_18 = arith.constant 0 : index
    %32 = vector.load %arg6[%c0_16, %c0_17, %c0_18] : memref<1x1x96xf32, #tpu.memory_space<vmem>>, vector<1x1x96xf32>
    %33 = vector.shape_cast %32 : vector<1x1x96xf32> to vector<1x96xf32>
    %34 = vector.broadcast %33 : vector<1x96xf32> to vector<8x96xf32>
    %35 = arith.addf %31, %34 : vector<8x96xf32>
    %c0_19 = arith.constant 0 : index
    %c0_20 = arith.constant 0 : index
    %c0_21 = arith.constant 0 : index
    %36 = vector.load %arg7[%c0_19, %c0_20, %c0_21] : memref<1x32x32xbf16, #tpu.memory_space<vmem>>, vector<1x32x32xbf16>
    %37 = vector.shape_cast %36 : vector<1x32x32xbf16> to vector<32x32xbf16>
    %cst_22 = arith.constant 0.000000e+00 : f32
    %38 = vector.broadcast %cst_22 : f32 to vector<8x32xf32>
    %39 = vector.extract_strided_slice %35 {offsets = [0, 0], sizes = [8, 8], strides = [1, 1]} : vector<8x96xf32> to vector<8x8xf32>
    %40 = vector.shape_cast %39 : vector<8x8xf32> to vector<1x8x8xf32>
    %41 = vector.extract_strided_slice %35 {offsets = [0, 32], sizes = [8, 8], strides = [1, 1]} : vector<8x96xf32> to vector<8x8xf32>
    %42 = vector.shape_cast %41 : vector<8x8xf32> to vector<1x8x8xf32>
    %43 = vector.extract_strided_slice %35 {offsets = [0, 64], sizes = [8, 8], strides = [1, 1]} : vector<8x96xf32> to vector<8x8xf32>
    %44 = vector.shape_cast %43 : vector<8x8xf32> to vector<1x8x8xf32>
    %45 = arith.truncf %40 : vector<1x8x8xf32> to vector<1x8x8xbf16>
    %46 = arith.truncf %42 : vector<1x8x8xf32> to vector<1x8x8xbf16>
    "tpu.trace_start"() <{level = 10 : i32, message = "bqd,bkd->bqk"}> : () -> ()
    %cst_23 = arith.constant dense<0.000000e+00> : vector<1x8x8xf32>
    %47 = tpu.matmul %45, %46, %cst_23 {dimension_numbers = #tpu.dot_dimension_numbers<[2], [2], [1], [1], [0, 0, 0, 1, 1, 1], [0], [0]>} : vector<1x8x8xbf16>, vector<1x8x8xbf16>, vector<1x8x8xf32> -> vector<1x8x8xf32>
    "tpu.trace_stop"() : () -> ()
    %cst_24 = arith.constant dense<0xFF800000> : vector<1x8xf32>
    %48 = vector.multi_reduction <maximumf>, %47, %cst_24 [2] : vector<1x8x8xf32> to vector<1x8xf32>
    %49 = vector.shape_cast %48 : vector<1x8xf32> to vector<1x8x1xf32>
    %50 = vector.broadcast %49 : vector<1x8x1xf32> to vector<1x8x8xf32>
    %51 = arith.subf %47, %50 : vector<1x8x8xf32>
    %52 = math.exp %51 : vector<1x8x8xf32>
    %cst_25 = arith.constant dense<0.000000e+00> : vector<1x8xf32>
    %53 = vector.multi_reduction <add>, %52, %cst_25 [2] : vector<1x8x8xf32> to vector<1x8xf32>
    %54 = vector.shape_cast %53 : vector<1x8xf32> to vector<1x8x1xf32>
    %55 = tpu.reciprocal %54 : vector<1x8x1xf32> -> vector<1x8x1xf32>
    %56 = vector.broadcast %55 : vector<1x8x1xf32> to vector<1x8x8xf32>
    %57 = arith.mulf %52, %56 : vector<1x8x8xf32>
    %58 = arith.truncf %57 : vector<1x8x8xf32> to vector<1x8x8xbf16>
    %59 = arith.truncf %44 : vector<1x8x8xf32> to vector<1x8x8xbf16>
    "tpu.trace_start"() <{level = 10 : i32, message = "bqk,bkd->bqd"}> : () -> ()
    %cst_26 = arith.constant dense<0.000000e+00> : vector<1x8x8xf32>
    %60 = tpu.matmul %58, %59, %cst_26 {dimension_numbers = #tpu.dot_dimension_numbers<[2], [1], [1], [2], [0, 0, 0, 1, 1, 2], [0], [0]>} : vector<1x8x8xbf16>, vector<1x8x8xbf16>, vector<1x8x8xf32> -> vector<1x8x8xf32>
    "tpu.trace_stop"() : () -> ()
    %61 = vector.shape_cast %60 : vector<1x8x8xf32> to vector<8x8xf32>
    %62 = arith.truncf %61 : vector<8x8xf32> to vector<8x8xbf16>
    %63 = vector.extract_strided_slice %37 {offsets = [0, 0], sizes = [8, 32], strides = [1, 1]} : vector<32x32xbf16> to vector<8x32xbf16>
    %cst_27 = arith.constant dense<0.000000e+00> : vector<8x32xf32>
    %64 = tpu.matmul %62, %63, %cst_27 {dimension_numbers = #tpu.dot_dimension_numbers<[1], [0], [0], [1], [0, 0, 1, 1], [], []>} : vector<8x8xbf16>, vector<8x32xbf16>, vector<8x32xf32> -> vector<8x32xf32>
    %65 = arith.addf %38, %64 : vector<8x32xf32>
    %66 = vector.extract_strided_slice %35 {offsets = [0, 8], sizes = [8, 8], strides = [1, 1]} : vector<8x96xf32> to vector<8x8xf32>
    %67 = vector.shape_cast %66 : vector<8x8xf32> to vector<1x8x8xf32>
    %68 = vector.extract_strided_slice %35 {offsets = [0, 40], sizes = [8, 8], strides = [1, 1]} : vector<8x96xf32> to vector<8x8xf32>
    %69 = vector.shape_cast %68 : vector<8x8xf32> to vector<1x8x8xf32>
    %70 = vector.extract_strided_slice %35 {offsets = [0, 72], sizes = [8, 8], strides = [1, 1]} : vector<8x96xf32> to vector<8x8xf32>
    %71 = vector.shape_cast %70 : vector<8x8xf32> to vector<1x8x8xf32>
    %72 = arith.truncf %67 : vector<1x8x8xf32> to vector<1x8x8xbf16>
    %73 = arith.truncf %69 : vector<1x8x8xf32> to vector<1x8x8xbf16>
    "tpu.trace_start"() <{level = 10 : i32, message = "bqd,bkd->bqk"}> : () -> ()
    %cst_28 = arith.constant dense<0.000000e+00> : vector<1x8x8xf32>
    %74 = tpu.matmul %72, %73, %cst_28 {dimension_numbers = #tpu.dot_dimension_numbers<[2], [2], [1], [1], [0, 0, 0, 1, 1, 1], [0], [0]>} : vector<1x8x8xbf16>, vector<1x8x8xbf16>, vector<1x8x8xf32> -> vector<1x8x8xf32>
    "tpu.trace_stop"() : () -> ()
    %cst_29 = arith.constant dense<0xFF800000> : vector<1x8xf32>
    %75 = vector.multi_reduction <maximumf>, %74, %cst_29 [2] : vector<1x8x8xf32> to vector<1x8xf32>
    %76 = vector.shape_cast %75 : vector<1x8xf32> to vector<1x8x1xf32>
    %77 = vector.broadcast %76 : vector<1x8x1xf32> to vector<1x8x8xf32>
    %78 = arith.subf %74, %77 : vector<1x8x8xf32>
    %79 = math.exp %78 : vector<1x8x8xf32>
    %cst_30 = arith.constant dense<0.000000e+00> : vector<1x8xf32>
    %80 = vector.multi_reduction <add>, %79, %cst_30 [2] : vector<1x8x8xf32> to vector<1x8xf32>
    %81 = vector.shape_cast %80 : vector<1x8xf32> to vector<1x8x1xf32>
    %82 = tpu.reciprocal %81 : vector<1x8x1xf32> -> vector<1x8x1xf32>
    %83 = vector.broadcast %82 : vector<1x8x1xf32> to vector<1x8x8xf32>
    %84 = arith.mulf %79, %83 : vector<1x8x8xf32>
    %85 = arith.truncf %84 : vector<1x8x8xf32> to vector<1x8x8xbf16>
    %86 = arith.truncf %71 : vector<1x8x8xf32> to vector<1x8x8xbf16>
    "tpu.trace_start"() <{level = 10 : i32, message = "bqk,bkd->bqd"}> : () -> ()
    %cst_31 = arith.constant dense<0.000000e+00> : vector<1x8x8xf32>
    %87 = tpu.matmul %85, %86, %cst_31 {dimension_numbers = #tpu.dot_dimension_numbers<[2], [1], [1], [2], [0, 0, 0, 1, 1, 2], [0], [0]>} : vector<1x8x8xbf16>, vector<1x8x8xbf16>, vector<1x8x8xf32> -> vector<1x8x8xf32>
    "tpu.trace_stop"() : () -> ()
    %88 = vector.shape_cast %87 : vector<1x8x8xf32> to vector<8x8xf32>
    %89 = arith.truncf %88 : vector<8x8xf32> to vector<8x8xbf16>
    %90 = vector.extract_strided_slice %37 {offsets = [8, 0], sizes = [8, 32], strides = [1, 1]} : vector<32x32xbf16> to vector<8x32xbf16>
    %cst_32 = arith.constant dense<0.000000e+00> : vector<8x32xf32>
    %91 = tpu.matmul %89, %90, %cst_32 {dimension_numbers = #tpu.dot_dimension_numbers<[1], [0], [0], [1], [0, 0, 1, 1], [], []>} : vector<8x8xbf16>, vector<8x32xbf16>, vector<8x32xf32> -> vector<8x32xf32>
    %92 = arith.addf %65, %91 : vector<8x32xf32>
    %93 = vector.extract_strided_slice %35 {offsets = [0, 16], sizes = [8, 8], strides = [1, 1]} : vector<8x96xf32> to vector<8x8xf32>
    %94 = vector.shape_cast %93 : vector<8x8xf32> to vector<1x8x8xf32>
    %95 = vector.extract_strided_slice %35 {offsets = [0, 48], sizes = [8, 8], strides = [1, 1]} : vector<8x96xf32> to vector<8x8xf32>
    %96 = vector.shape_cast %95 : vector<8x8xf32> to vector<1x8x8xf32>
    %97 = vector.extract_strided_slice %35 {offsets = [0, 80], sizes = [8, 8], strides = [1, 1]} : vector<8x96xf32> to vector<8x8xf32>
    %98 = vector.shape_cast %97 : vector<8x8xf32> to vector<1x8x8xf32>
    %99 = arith.truncf %94 : vector<1x8x8xf32> to vector<1x8x8xbf16>
    %100 = arith.truncf %96 : vector<1x8x8xf32> to vector<1x8x8xbf16>
    "tpu.trace_start"() <{level = 10 : i32, message = "bqd,bkd->bqk"}> : () -> ()
    %cst_33 = arith.constant dense<0.000000e+00> : vector<1x8x8xf32>
    %101 = tpu.matmul %99, %100, %cst_33 {dimension_numbers = #tpu.dot_dimension_numbers<[2], [2], [1], [1], [0, 0, 0, 1, 1, 1], [0], [0]>} : vector<1x8x8xbf16>, vector<1x8x8xbf16>, vector<1x8x8xf32> -> vector<1x8x8xf32>
    "tpu.trace_stop"() : () -> ()
    %cst_34 = arith.constant dense<0xFF800000> : vector<1x8xf32>
    %102 = vector.multi_reduction <maximumf>, %101, %cst_34 [2] : vector<1x8x8xf32> to vector<1x8xf32>
    %103 = vector.shape_cast %102 : vector<1x8xf32> to vector<1x8x1xf32>
    %104 = vector.broadcast %103 : vector<1x8x1xf32> to vector<1x8x8xf32>
    %105 = arith.subf %101, %104 : vector<1x8x8xf32>
    %106 = math.exp %105 : vector<1x8x8xf32>
    %cst_35 = arith.constant dense<0.000000e+00> : vector<1x8xf32>
    %107 = vector.multi_reduction <add>, %106, %cst_35 [2] : vector<1x8x8xf32> to vector<1x8xf32>
    %108 = vector.shape_cast %107 : vector<1x8xf32> to vector<1x8x1xf32>
    %109 = tpu.reciprocal %108 : vector<1x8x1xf32> -> vector<1x8x1xf32>
    %110 = vector.broadcast %109 : vector<1x8x1xf32> to vector<1x8x8xf32>
    %111 = arith.mulf %106, %110 : vector<1x8x8xf32>
    %112 = arith.truncf %111 : vector<1x8x8xf32> to vector<1x8x8xbf16>
    %113 = arith.truncf %98 : vector<1x8x8xf32> to vector<1x8x8xbf16>
    "tpu.trace_start"() <{level = 10 : i32, message = "bqk,bkd->bqd"}> : () -> ()
    %cst_36 = arith.constant dense<0.000000e+00> : vector<1x8x8xf32>
    %114 = tpu.matmul %112, %113, %cst_36 {dimension_numbers = #tpu.dot_dimension_numbers<[2], [1], [1], [2], [0, 0, 0, 1, 1, 2], [0], [0]>} : vector<1x8x8xbf16>, vector<1x8x8xbf16>, vector<1x8x8xf32> -> vector<1x8x8xf32>
    "tpu.trace_stop"() : () -> ()
    %115 = vector.shape_cast %114 : vector<1x8x8xf32> to vector<8x8xf32>
    %116 = arith.truncf %115 : vector<8x8xf32> to vector<8x8xbf16>
    %117 = vector.extract_strided_slice %37 {offsets = [16, 0], sizes = [8, 32], strides = [1, 1]} : vector<32x32xbf16> to vector<8x32xbf16>
    %cst_37 = arith.constant dense<0.000000e+00> : vector<8x32xf32>
    %118 = tpu.matmul %116, %117, %cst_37 {dimension_numbers = #tpu.dot_dimension_numbers<[1], [0], [0], [1], [0, 0, 1, 1], [], []>} : vector<8x8xbf16>, vector<8x32xbf16>, vector<8x32xf32> -> vector<8x32xf32>
    %119 = arith.addf %92, %118 : vector<8x32xf32>
    %120 = vector.extract_strided_slice %35 {offsets = [0, 24], sizes = [8, 8], strides = [1, 1]} : vector<8x96xf32> to vector<8x8xf32>
    %121 = vector.shape_cast %120 : vector<8x8xf32> to vector<1x8x8xf32>
    %122 = vector.extract_strided_slice %35 {offsets = [0, 56], sizes = [8, 8], strides = [1, 1]} : vector<8x96xf32> to vector<8x8xf32>
    %123 = vector.shape_cast %122 : vector<8x8xf32> to vector<1x8x8xf32>
    %124 = vector.extract_strided_slice %35 {offsets = [0, 88], sizes = [8, 8], strides = [1, 1]} : vector<8x96xf32> to vector<8x8xf32>
    %125 = vector.shape_cast %124 : vector<8x8xf32> to vector<1x8x8xf32>
    %126 = arith.truncf %121 : vector<1x8x8xf32> to vector<1x8x8xbf16>
    %127 = arith.truncf %123 : vector<1x8x8xf32> to vector<1x8x8xbf16>
    "tpu.trace_start"() <{level = 10 : i32, message = "bqd,bkd->bqk"}> : () -> ()
    %cst_38 = arith.constant dense<0.000000e+00> : vector<1x8x8xf32>
    %128 = tpu.matmul %126, %127, %cst_38 {dimension_numbers = #tpu.dot_dimension_numbers<[2], [2], [1], [1], [0, 0, 0, 1, 1, 1], [0], [0]>} : vector<1x8x8xbf16>, vector<1x8x8xbf16>, vector<1x8x8xf32> -> vector<1x8x8xf32>
    "tpu.trace_stop"() : () -> ()
    %cst_39 = arith.constant dense<0xFF800000> : vector<1x8xf32>
    %129 = vector.multi_reduction <maximumf>, %128, %cst_39 [2] : vector<1x8x8xf32> to vector<1x8xf32>
    %130 = vector.shape_cast %129 : vector<1x8xf32> to vector<1x8x1xf32>
    %131 = vector.broadcast %130 : vector<1x8x1xf32> to vector<1x8x8xf32>
    %132 = arith.subf %128, %131 : vector<1x8x8xf32>
    %133 = math.exp %132 : vector<1x8x8xf32>
    %cst_40 = arith.constant dense<0.000000e+00> : vector<1x8xf32>
    %134 = vector.multi_reduction <add>, %133, %cst_40 [2] : vector<1x8x8xf32> to vector<1x8xf32>
    %135 = vector.shape_cast %134 : vector<1x8xf32> to vector<1x8x1xf32>
    %136 = tpu.reciprocal %135 : vector<1x8x1xf32> -> vector<1x8x1xf32>
    %137 = vector.broadcast %136 : vector<1x8x1xf32> to vector<1x8x8xf32>
    %138 = arith.mulf %133, %137 : vector<1x8x8xf32>
    %139 = arith.truncf %138 : vector<1x8x8xf32> to vector<1x8x8xbf16>
    %140 = arith.truncf %125 : vector<1x8x8xf32> to vector<1x8x8xbf16>
    "tpu.trace_start"() <{level = 10 : i32, message = "bqk,bkd->bqd"}> : () -> ()
    %cst_41 = arith.constant dense<0.000000e+00> : vector<1x8x8xf32>
    %141 = tpu.matmul %139, %140, %cst_41 {dimension_numbers = #tpu.dot_dimension_numbers<[2], [1], [1], [2], [0, 0, 0, 1, 1, 2], [0], [0]>} : vector<1x8x8xbf16>, vector<1x8x8xbf16>, vector<1x8x8xf32> -> vector<1x8x8xf32>
    "tpu.trace_stop"() : () -> ()
    %142 = vector.shape_cast %141 : vector<1x8x8xf32> to vector<8x8xf32>
    %143 = arith.truncf %142 : vector<8x8xf32> to vector<8x8xbf16>
    %144 = vector.extract_strided_slice %37 {offsets = [24, 0], sizes = [8, 32], strides = [1, 1]} : vector<32x32xbf16> to vector<8x32xbf16>
    %cst_42 = arith.constant dense<0.000000e+00> : vector<8x32xf32>
    %145 = tpu.matmul %143, %144, %cst_42 {dimension_numbers = #tpu.dot_dimension_numbers<[1], [0], [0], [1], [0, 0, 1, 1], [], []>} : vector<8x8xbf16>, vector<8x32xbf16>, vector<8x32xf32> -> vector<8x32xf32>
    %146 = arith.addf %119, %145 : vector<8x32xf32>
    %147 = arith.addf %3, %146 : vector<8x32xf32>
    %c0_43 = arith.constant 0 : index
    %c0_44 = arith.constant 0 : index
    %c0_45 = arith.constant 0 : index
    %148 = vector.load %arg8[%c0_43, %c0_44, %c0_45] : memref<1x1x32xf32, #tpu.memory_space<vmem>>, vector<1x1x32xf32>
    %149 = vector.shape_cast %148 : vector<1x1x32xf32> to vector<1x32xf32>
    %150 = vector.broadcast %149 : vector<1x32xf32> to vector<8x32xf32>
    %151 = arith.addf %147, %150 : vector<8x32xf32>
    %c0_46 = arith.constant 0 : index
    %c0_47 = arith.constant 0 : index
    %c0_48 = arith.constant 0 : index
    %152 = vector.load %arg9[%c0_46, %c0_47, %c0_48] : memref<1x1x32xf32, #tpu.memory_space<vmem>>, vector<1x1x32xf32>
    %153 = vector.shape_cast %152 : vector<1x1x32xf32> to vector<1x32xf32>
    %c0_49 = arith.constant 0 : index
    %c0_50 = arith.constant 0 : index
    %c0_51 = arith.constant 0 : index
    %154 = vector.load %arg10[%c0_49, %c0_50, %c0_51] : memref<1x1x32xf32, #tpu.memory_space<vmem>>, vector<1x1x32xf32>
    %155 = vector.shape_cast %154 : vector<1x1x32xf32> to vector<1x32xf32>
    %cst_52 = arith.constant dense<0.000000e+00> : vector<8xf32>
    %156 = vector.multi_reduction <add>, %151, %cst_52 [1] : vector<8x32xf32> to vector<8xf32>
    %157 = vector.shape_cast %156 : vector<8xf32> to vector<8x1xf32>
    %cst_53 = arith.constant 3.200000e+01 : f32
    %158 = vector.broadcast %cst_53 : f32 to vector<8x1xf32>
    %159 = arith.divf %157, %158 : vector<8x1xf32>
    %160 = vector.broadcast %159 : vector<8x1xf32> to vector<8x32xf32>
    %161 = arith.subf %151, %160 : vector<8x32xf32>
    %162 = arith.mulf %161, %161 : vector<8x32xf32>
    %cst_54 = arith.constant dense<0.000000e+00> : vector<8xf32>
    %163 = vector.multi_reduction <add>, %162, %cst_54 [1] : vector<8x32xf32> to vector<8xf32>
    %164 = vector.shape_cast %163 : vector<8xf32> to vector<8x1xf32>
    %cst_55 = arith.constant 3.200000e+01 : f32
    %165 = vector.broadcast %cst_55 : f32 to vector<8x1xf32>
    %166 = arith.divf %164, %165 : vector<8x1xf32>
    %cst_56 = arith.constant 9.99999974E-6 : f32
    %167 = vector.broadcast %cst_56 : f32 to vector<8x1xf32>
    %168 = arith.addf %166, %167 : vector<8x1xf32>
    %169 = math.rsqrt %168 : vector<8x1xf32>
    %170 = vector.broadcast %169 : vector<8x1xf32> to vector<8x32xf32>
    %171 = arith.mulf %161, %170 : vector<8x32xf32>
    %172 = vector.broadcast %153 : vector<1x32xf32> to vector<8x32xf32>
    %173 = arith.mulf %171, %172 : vector<8x32xf32>
    %174 = vector.broadcast %155 : vector<1x32xf32> to vector<8x32xf32>
    %175 = arith.addf %173, %174 : vector<8x32xf32>
    %176 = arith.truncf %175 : vector<8x32xf32> to vector<8x32xbf16>
    %c0_57 = arith.constant 0 : index
    %c0_58 = arith.constant 0 : index
    %c0_59 = arith.constant 0 : index
    %177 = vector.load %arg11[%c0_57, %c0_58, %c0_59] : memref<1x32x64xbf16, #tpu.memory_space<vmem>>, vector<1x32x64xbf16>
    %178 = vector.shape_cast %177 : vector<1x32x64xbf16> to vector<32x64xbf16>
    %cst_60 = arith.constant dense<0.000000e+00> : vector<8x64xf32>
    %179 = tpu.matmul %176, %178, %cst_60 {dimension_numbers = #tpu.dot_dimension_numbers<[1], [0], [0], [1], [0, 0, 1, 1], [], []>} : vector<8x32xbf16>, vector<32x64xbf16>, vector<8x64xf32> -> vector<8x64xf32>
    %c0_61 = arith.constant 0 : index
    %c0_62 = arith.constant 0 : index
    %c0_63 = arith.constant 0 : index
    %180 = vector.load %arg12[%c0_61, %c0_62, %c0_63] : memref<1x1x64xf32, #tpu.memory_space<vmem>>, vector<1x1x64xf32>
    %181 = vector.shape_cast %180 : vector<1x1x64xf32> to vector<1x64xf32>
    %182 = vector.broadcast %181 : vector<1x64xf32> to vector<8x64xf32>
    %183 = arith.addf %179, %182 : vector<8x64xf32>
    %cst_64 = arith.constant 5.000000e-01 : f32
    %184 = vector.broadcast %cst_64 : f32 to vector<8x64xf32>
    %185 = arith.mulf %184, %183 : vector<8x64xf32>
    %cst_65 = arith.constant 0.707106769 : f32
    %186 = vector.broadcast %cst_65 : f32 to vector<8x64xf32>
    %187 = arith.mulf %183, %186 : vector<8x64xf32>
    %188 = math.erf %187 : vector<8x64xf32>
    %cst_66 = arith.constant 1.000000e+00 : f32
    %189 = vector.broadcast %cst_66 : f32 to vector<8x64xf32>
    %190 = arith.addf %189, %188 : vector<8x64xf32>
    %191 = arith.mulf %185, %190 : vector<8x64xf32>
    %192 = arith.truncf %191 : vector<8x64xf32> to vector<8x64xbf16>
    %c0_67 = arith.constant 0 : index
    %c0_68 = arith.constant 0 : index
    %c0_69 = arith.constant 0 : index
    %193 = vector.load %arg13[%c0_67, %c0_68, %c0_69] : memref<1x64x32xbf16, #tpu.memory_space<vmem>>, vector<1x64x32xbf16>
    %194 = vector.shape_cast %193 : vector<1x64x32xbf16> to vector<64x32xbf16>
    %cst_70 = arith.constant dense<0.000000e+00> : vector<8x32xf32>
    %195 = tpu.matmul %192, %194, %cst_70 {dimension_numbers = #tpu.dot_dimension_numbers<[1], [0], [0], [1], [0, 0, 1, 1], [], []>} : vector<8x64xbf16>, vector<64x32xbf16>, vector<8x32xf32> -> vector<8x32xf32>
    %c0_71 = arith.constant 0 : index
    %c0_72 = arith.constant 0 : index
    %c0_73 = arith.constant 0 : index
    %196 = vector.load %arg14[%c0_71, %c0_72, %c0_73] : memref<1x1x32xf32, #tpu.memory_space<vmem>>, vector<1x1x32xf32>
    %197 = vector.shape_cast %196 : vector<1x1x32xf32> to vector<1x32xf32>
    %198 = vector.broadcast %197 : vector<1x32xf32> to vector<8x32xf32>
    %199 = arith.addf %195, %198 : vector<8x32xf32>
    %200 = arith.addf %151, %199 : vector<8x32xf32>
    %c0_74 = arith.constant 0 : index
    %c0_75 = arith.constant 0 : index
    %201 = vector.load %arg15[%c0_74, %c0_75] : memref<8x32xf32, #tpu.memory_space<vmem>>, vector<8x32xf32>
    tpu.vector_store %arg15[%c0_74, %c0_75], %200 {strides = array<i32>} : memref<8x32xf32, #tpu.memory_space<vmem>>, vector<8x32xf32>,
    return
  }
  func.func @transform_0(%arg0: i32, %arg1: i32) -> (i32, i32) {
    %c0_i32 = arith.constant 0 : i32
    %c0_i32_0 = arith.constant 0 : i32
    return %arg0, %c0_i32 : i32, i32
  }
  func.func @transform_1(%arg0: i32, %arg1: i32) -> (i32, i32, i32) {
    %c0_i32 = arith.constant 0 : i32
    %c0_i32_0 = arith.constant 0 : i32
    %c0_i32_1 = arith.constant 0 : i32
    return %arg1, %c0_i32, %c0_i32_0 : i32, i32, i32
  }
  func.func @transform_2(%arg0: i32, %arg1: i32) -> (i32, i32, i32) {
    %c0_i32 = arith.constant 0 : i32
    %c0_i32_0 = arith.constant 0 : i32
    %c0_i32_1 = arith.constant 0 : i32
    return %arg1, %c0_i32, %c0_i32_0 : i32, i32, i32
  }
  func.func @transform_3(%arg0: i32, %arg1: i32) -> (i32, i32, i32) {
    %c0_i32 = arith.constant 0 : i32
    %c0_i32_0 = arith.constant 0 : i32
    %c0_i32_1 = arith.constant 0 : i32
    return %arg1, %c0_i32, %c0_i32_0 : i32, i32, i32
  }
  func.func @transform_4(%arg0: i32, %arg1: i32) -> (i32, i32, i32) {
    %c0_i32 = arith.constant 0 : i32
    %c0_i32_0 = arith.constant 0 : i32
    %c0_i32_1 = arith.constant 0 : i32
    return %arg1, %c0_i32, %c0_i32_0 : i32, i32, i32
  }
  func.func @transform_5(%arg0: i32, %arg1: i32) -> (i32, i32, i32) {
    %c0_i32 = arith.constant 0 : i32
    %c0_i32_0 = arith.constant 0 : i32
    %c0_i32_1 = arith.constant 0 : i32
    return %arg1, %c0_i32, %c0_i32_0 : i32, i32, i32
  }
  func.func @transform_6(%arg0: i32, %arg1: i32) -> (i32, i32, i32) {
    %c0_i32 = arith.constant 0 : i32
    %c0_i32_0 = arith.constant 0 : i32
    %c0_i32_1 = arith.constant 0 : i32
    return %arg1, %c0_i32, %c0_i32_0 : i32, i32, i32
  }
  func.func @transform_7(%arg0: i32, %arg1: i32) -> (i32, i32, i32) {
    %c0_i32 = arith.constant 0 : i32
    %c0_i32_0 = arith.constant 0 : i32
    %c0_i32_1 = arith.constant 0 : i32
    return %arg1, %c0_i32, %c0_i32_0 : i32, i32, i32
  }
  func.func @transform_8(%arg0: i32, %arg1: i32) -> (i32, i32, i32) {
    %c0_i32 = arith.constant 0 : i32
    %c0_i32_0 = arith.constant 0 : i32
    %c0_i32_1 = arith.constant 0 : i32
    return %arg1, %c0_i32, %c0_i32_0 : i32, i32, i32
  }
  func.func @transform_9(%arg0: i32, %arg1: i32) -> (i32, i32, i32) {
    %c0_i32 = arith.constant 0 : i32
    %c0_i32_0 = arith.constant 0 : i32
    %c0_i32_1 = arith.constant 0 : i32
    return %arg1, %c0_i32, %c0_i32_0 : i32, i32, i32
  }
  func.func @transform_10(%arg0: i32, %arg1: i32) -> (i32, i32, i32) {
    %c0_i32 = arith.constant 0 : i32
    %c0_i32_0 = arith.constant 0 : i32
    %c0_i32_1 = arith.constant 0 : i32
    return %arg1, %c0_i32, %c0_i32_0 : i32, i32, i32
  }
  func.func @transform_11(%arg0: i32, %arg1: i32) -> (i32, i32, i32) {
    %c0_i32 = arith.constant 0 : i32
    %c0_i32_0 = arith.constant 0 : i32
    %c0_i32_1 = arith.constant 0 : i32
    return %arg1, %c0_i32, %c0_i32_0 : i32, i32, i32
  }
  func.func @transform_12(%arg0: i32, %arg1: i32) -> (i32, i32, i32) {
    %c0_i32 = arith.constant 0 : i32
    %c0_i32_0 = arith.constant 0 : i32
    %c0_i32_1 = arith.constant 0 : i32
    return %arg1, %c0_i32, %c0_i32_0 : i32, i32, i32
  }
  func.func @transform_13(%arg0: i32, %arg1: i32) -> (i32, i32) {
    %c0_i32 = arith.constant 0 : i32
    %c0_i32_0 = arith.constant 0 : i32
    return %arg0, %c0_i32 : i32, i32
  }
}

</mosaic_0001>

<llo_original>
// kernel: tpu_custom_call.1
$region0: #{tpu_custom_call.1}
  #allocation0 [shape = 'u32[]', space=smem, size = 0x4, offset = 0x4, fixed_abs, tag = 'smem constant byte address 0x4 - core index']
  #allocation1 [shape = 'u32[144,128]{1,0:T(1,128)}', space=vmem, size = 0x12000, scoped, tag = 'internal scratch']
  %s0 = inlined_call_operand.hbm [shape: f32[16,32], index: 0, kind: input, shape index: {}]
  %s1 = inlined_call_operand.hbm [shape: f32[2,1,32], index: 1, kind: input, shape index: {}]
  %s2 = inlined_call_operand.vmem [shape: f32[2,1,32], index: 2, kind: input, shape index: {}]
  %s3 = inlined_call_operand.vmem [shape: bf16[2,32,96], index: 3, kind: input, shape index: {}]
  %s4 = inlined_call_operand.vmem [shape: f32[2,1,96], index: 4, kind: input, shape index: {}]
  %s5 = inlined_call_operand.vmem [shape: bf16[2,32,32], index: 5, kind: input, shape index: {}]
  %s6 = inlined_call_operand.vmem [shape: f32[2,1,32], index: 6, kind: input, shape index: {}]
  %s7 = inlined_call_operand.vmem [shape: f32[2,1,32], index: 7, kind: input, shape index: {}]
  %s8 = inlined_call_operand.vmem [shape: f32[2,1,32], index: 8, kind: input, shape index: {}]
  %s9 = inlined_call_operand.vmem [shape: bf16[2,32,64], index: 9, kind: input, shape index: {}]
  %s10 = inlined_call_operand.vmem [shape: f32[2,1,64], index: 10, kind: input, shape index: {}]
  %s11 = inlined_call_operand.vmem [shape: bf16[2,64,32], index: 11, kind: input, shape index: {}]
  %s12 = inlined_call_operand.vmem [shape: f32[2,1,32], index: 12, kind: input, shape index: {}]
  %s13 = inlined_call_operand.hbm [shape: f32[16,32], index: 13, kind: output, shape index: {}]
  %s14 = sld [smem:[#allocation0]]
  $region97: #{tpu_custom_call.1} parent=0
    _
  %s16 = ssub.s32 1, %s14
  %s17 = scalar_select 0, %s16, %s14
  $region1: #{tpu_custom_call.1} parent=0
    #allocation2 [shape = 'u8[8192]{0}', space=vmem, size = 0x2000, scoped, tag = 'input window, operand 0']
    #allocation3 [shape = 's32[2]{0}', space=sflag, size = 0x8, scoped, tag = 'scoped memory for tpu_custom_call.1']
    #allocation4 [shape = 's32[2]{0}', space=sflag, size = 0x8, scoped, tag = 'scoped memory for tpu_custom_call.1']
    #allocation5 [shape = 'u8[1024]{0}', space=vmem, size = 0x400, scoped, tag = 'input window, operand 1']
    #allocation6 [shape = 's32[2]{0}', space=sflag, size = 0x8, scoped, tag = 'scoped memory for tpu_custom_call.1']
    #allocation7 [shape = 'u8[8192]{0}', space=vmem, size = 0x2000, scoped, tag = 'output window, operand 0']
    %18 = vsyncpa [#allocation3], 0
    %s19 = scalar_lea.sflag [#allocation3], 1
    %20 = vsyncpa %s19, 0
    %21 = vsyncpa [#allocation6], 0
    %s22 = scalar_lea.sflag [#allocation6], 1
    %23 = vsyncpa %s22, 0
    %24 = vsyncpa [#allocation4], 0
    %s25 = scalar_lea.sflag [#allocation4], 1
    %26 = vsyncpa %s25, 0
    loop: start=0, step=1, limit=6
    $region2: #{tpu_custom_call.1} parent=1 // loop_pre_header
      _
    $region3: #{tpu_custom_call.1} parent=1 // loop_header
      %s28 = sphi 0, %s32
      %p29 = scmp.ge.s32.totalorder %s28, 6
      %s35 = sphi 0, %s47
      %s36 = sphi 0, %s43
      %s37 = sphi 0, %s35
      %s38 = sphi 0, %s36
      %s39 = sphi 0, %s37
      %s40 = sphi 0, %s38
      %s50 = sphi 0, %s52
      %s53 = sphi 0, %s50
      %s54 = sphi 0, %s53
      %s70 = sphi 0, %s54
      %s76 = sphi 0, %s78
      %s79 = sphi 0, %s76
      %s80 = sphi 0, %s79
      %s96 = sphi 0, %s80
      %s102 = sphi 0, %s104
      %s105 = sphi 0, %s102
      %s106 = sphi 0, %s105
      %s122 = sphi 0, %s106
      %s128 = sphi 0, %s130
      %s131 = sphi 0, %s128
      %s132 = sphi 0, %s131
      %s148 = sphi 0, %s132
      %s154 = sphi 0, %s156
      %s157 = sphi 0, %s154
      %s158 = sphi 0, %s157
      %s174 = sphi 0, %s158
      %s180 = sphi 0, %s182
      %s183 = sphi 0, %s180
      %s184 = sphi 0, %s183
      %s200 = sphi 0, %s184
      %s206 = sphi 0, %s208
      %s209 = sphi 0, %s206
      %s210 = sphi 0, %s209
      %s226 = sphi 0, %s210
      %s232 = sphi 0, %s234
      %s235 = sphi 0, %s232
      %s236 = sphi 0, %s235
      %s252 = sphi 0, %s236
      %s258 = sphi 0, %s260
      %s261 = sphi 0, %s258
      %s262 = sphi 0, %s261
      %s278 = sphi 0, %s262
      %s284 = sphi 0, %s286
      %s287 = sphi 0, %s284
      %s288 = sphi 0, %s287
      %s304 = sphi 0, %s288
      %s310 = sphi 0, %s312
      %s313 = sphi 0, %s310
      %s314 = sphi 0, %s313
      %s330 = sphi 0, %s314
      %s336 = sphi 0, %s338
      %s339 = sphi 0, %s336
      %s340 = sphi 0, %s339
      %s356 = sphi 0, %s340
      %s362 = sphi 0, %s364
      %s365 = sphi 0, %s362
      %s366 = sphi 0, %s365
      %s382 = sphi 0, %s366
      %s388 = sphi 0, %s390
      %s391 = sphi 0, %s388
      %s392 = sphi 0, %s391
      %s408 = sphi 0, %s392
    $region4: #{tpu_custom_call.1} parent=1 // loop_header_branch
      %31 = sbr.rel (%p29) target = $region8
    $region5: #{tpu_custom_call.1} parent=1 // loop_body
      %s33 = ssub.s32 %s28, 1
      %s34 = ssub.s32 %s28, 2
      %s41 = sadd.s32 1, %s36
      %p42 = scmp.ge.s32.totalorder %s41, 2
      %s43 = scalar_select %p42, 0, %s41
      %s44 = sadd.s32 1, %s35
      %s45 = scalar_select %p42, %s44, %s35
      %p46 = scmp.ge.s32.totalorder %s45, 2
      %s47 = scalar_select %p46, 0, %s45
      %s48 = ssub.s32 %s35, %s47
      %p49 = scmp.eq.s32.totalorder %s48, 0
      %s51 = sadd.s32 %s50, 1
      %s52 = scalar_select %p49, %s50, %s51
      %p55 = pneg %p49
      %p56 = scmp.eq.s32.totalorder %s28, 3
      %p57 = por %p55, %p56
      %p58 = scmp.ne.s32.totalorder %s50, %s53
      %p59 = scmp.eq.s32.totalorder %s28, 0
      %p60 = por %p58, %p59
      %p61 = scmp.ne.s32.totalorder %s50, %s53
      %p62 = scmp.eq.s32.totalorder %s33, 3
      %p63 = por %p61, %p62
      %p64 = scmp.ne.s32.totalorder %s53, %s54
      %p65 = scmp.eq.s32.totalorder %s33, 0
      %p66 = por %p64, %p65
      %p67 = scmp.ne.s32.totalorder %s53, %s54
      %p68 = scmp.eq.s32.totalorder %s34, 3
      %p69 = por %p67, %p68
      %p71 = scmp.ne.s32.totalorder %s54, %s70
      %p72 = scmp.eq.s32.totalorder %s34, 0
      %p73 = por %p71, %p72
      %s74 = ssub.s32 %s36, %s43
      %p75 = scmp.eq.s32.totalorder %s74, 0
      %s77 = sadd.s32 %s76, 1
      %s78 = scalar_select %p75, %s76, %s77
      %p81 = pneg %p75
      %p82 = scmp.eq.s32.totalorder %s28, 3
      %p83 = por %p81, %p82
      %p84 = scmp.ne.s32.totalorder %s76, %s79
      %p85 = scmp.eq.s32.totalorder %s28, 0
      %p86 = por %p84, %p85
      %p87 = scmp.ne.s32.totalorder %s76, %s79
      %p88 = scmp.eq.s32.totalorder %s33, 3
      %p89 = por %p87, %p88
      %p90 = scmp.ne.s32.totalorder %s79, %s80
      %p91 = scmp.eq.s32.totalorder %s33, 0
      %p92 = por %p90, %p91
      %p93 = scmp.ne.s32.totalorder %s79, %s80
      %p94 = scmp.eq.s32.totalorder %s34, 3
      %p95 = por %p93, %p94
      %p97 = scmp.ne.s32.totalorder %s80, %s96
      %p98 = scmp.eq.s32.totalorder %s34, 0
      %p99 = por %p97, %p98
      %s100 = ssub.s32 %s36, %s43
      %p101 = scmp.eq.s32.totalorder %s100, 0
      %s103 = sadd.s32 %s102, 1
      %s104 = scalar_select %p101, %s102, %s103
      %p107 = pneg %p101
      %p108 = scmp.eq.s32.totalorder %s28, 3
      %p109 = por %p107, %p108
      %p110 = scmp.ne.s32.totalorder %s102, %s105
      %p111 = scmp.eq.s32.totalorder %s28, 0
      %p112 = por %p110, %p111
      %p113 = scmp.ne.s32.totalorder %s102, %s105
      %p114 = scmp.eq.s32.totalorder %s33, 3
      %p115 = por %p113, %p114
      %p116 = scmp.ne.s32.totalorder %s105, %s106
      %p117 = scmp.eq.s32.totalorder %s33, 0
      %p118 = por %p116, %p117
      %p119 = scmp.ne.s32.totalorder %s105, %s106
      %p120 = scmp.eq.s32.totalorder %s34, 3
      %p121 = por %p119, %p120
      %p123 = scmp.ne.s32.totalorder %s106, %s122
      %p124 = scmp.eq.s32.totalorder %s34, 0
      %p125 = por %p123, %p124
      %s126 = ssub.s32 %s36, %s43
      %p127 = scmp.eq.s32.totalorder %s126, 0
      %s129 = sadd.s32 %s128, 1
      %s130 = scalar_select %p127, %s128, %s129
      %p133 = pneg %p127
      %p134 = scmp.eq.s32.totalorder %s28, 3
      %p135 = por %p133, %p134
      %p136 = scmp.ne.s32.totalorder %s128, %s131
      %p137 = scmp.eq.s32.totalorder %s28, 0
      %p138 = por %p136, %p137
      %p139 = scmp.ne.s32.totalorder %s128, %s131
      %p140 = scmp.eq.s32.totalorder %s33, 3
      %p141 = por %p139, %p140
      %p142 = scmp.ne.s32.totalorder %s131, %s132
      %p143 = scmp.eq.s32.totalorder %s33, 0
      %p144 = por %p142, %p143
      %p145 = scmp.ne.s32.totalorder %s131, %s132
      %p146 = scmp.eq.s32.totalorder %s34, 3
      %p147 = por %p145, %p146
      %p149 = scmp.ne.s32.totalorder %s132, %s148
      %p150 = scmp.eq.s32.totalorder %s34, 0
      %p151 = por %p149, %p150
      %s152 = ssub.s32 %s36, %s43
      %p153 = scmp.eq.s32.totalorder %s152, 0
      %s155 = sadd.s32 %s154, 1
      %s156 = scalar_select %p153, %s154, %s155
      %p159 = pneg %p153
      %p160 = scmp.eq.s32.totalorder %s28, 3
      %p161 = por %p159, %p160
      %p162 = scmp.ne.s32.totalorder %s154, %s157
      %p163 = scmp.eq.s32.totalorder %s28, 0
      %p164 = por %p162, %p163
      %p165 = scmp.ne.s32.totalorder %s154, %s157
      %p166 = scmp.eq.s32.totalorder %s33, 3
      %p167 = por %p165, %p166
      %p168 = scmp.ne.s32.totalorder %s157, %s158
      %p169 = scmp.eq.s32.totalorder %s33, 0
      %p170 = por %p168, %p169
      %p171 = scmp.ne.s32.totalorder %s157, %s158
      %p172 = scmp.eq.s32.totalorder %s34, 3
      %p173 = por %p171, %p172
      %p175 = scmp.ne.s32.totalorder %s158, %s174
      %p176 = scmp.eq.s32.totalorder %s34, 0
      %p177 = por %p175, %p176
      %s178 = ssub.s32 %s36, %s43
      %p179 = scmp.eq.s32.totalorder %s178, 0
      %s181 = sadd.s32 %s180, 1
      %s182 = scalar_select %p179, %s180, %s181
      %p185 = pneg %p179
      %p186 = scmp.eq.s32.totalorder %s28, 3
      %p187 = por %p185, %p186
      %p188 = scmp.ne.s32.totalorder %s180, %s183
      %p189 = scmp.eq.s32.totalorder %s28, 0
      %p190 = por %p188, %p189
      %p191 = scmp.ne.s32.totalorder %s180, %s183
      %p192 = scmp.eq.s32.totalorder %s33, 3
      %p193 = por %p191, %p192
      %p194 = scmp.ne.s32.totalorder %s183, %s184
      %p195 = scmp.eq.s32.totalorder %s33, 0
      %p196 = por %p194, %p195
      %p197 = scmp.ne.s32.totalorder %s183, %s184
      %p198 = scmp.eq.s32.totalorder %s34, 3
      %p199 = por %p197, %p198
      %p201 = scmp.ne.s32.totalorder %s184, %s200
      %p202 = scmp.eq.s32.totalorder %s34, 0
      %p203 = por %p201, %p202
      %s204 = ssub.s32 %s36, %s43
      %p205 = scmp.eq.s32.totalorder %s204, 0
      %s207 = sadd.s32 %s206, 1
      %s208 = scalar_select %p205, %s206, %s207
      %p211 = pneg %p205
      %p212 = scmp.eq.s32.totalorder %s28, 3
      %p213 = por %p211, %p212
      %p214 = scmp.ne.s32.totalorder %s206, %s209
      %p215 = scmp.eq.s32.totalorder %s28, 0
      %p216 = por %p214, %p215
      %p217 = scmp.ne.s32.totalorder %s206, %s209
      %p218 = scmp.eq.s32.totalorder %s33, 3
      %p219 = por %p217, %p218
      %p220 = scmp.ne.s32.totalorder %s209, %s210
      %p221 = scmp.eq.s32.totalorder %s33, 0
      %p222 = por %p220, %p221
      %p223 = scmp.ne.s32.totalorder %s209, %s210
      %p224 = scmp.eq.s32.totalorder %s34, 3
      %p225 = por %p223, %p224
      %p227 = scmp.ne.s32.totalorder %s210, %s226
      %p228 = scmp.eq.s32.totalorder %s34, 0
      %p229 = por %p227, %p228
      %s230 = ssub.s32 %s36, %s43
      %p231 = scmp.eq.s32.totalorder %s230, 0
      %s233 = sadd.s32 %s232, 1
      %s234 = scalar_select %p231, %s232, %s233
      %p237 = pneg %p231
      %p238 = scmp.eq.s32.totalorder %s28, 3
      %p239 = por %p237, %p238
      %p240 = scmp.ne.s32.totalorder %s232, %s235
      %p241 = scmp.eq.s32.totalorder %s28, 0
      %p242 = por %p240, %p241
      %p243 = scmp.ne.s32.totalorder %s232, %s235
      %p244 = scmp.eq.s32.totalorder %s33, 3
      %p245 = por %p243, %p244
      %p246 = scmp.ne.s32.totalorder %s235, %s236
      %p247 = scmp.eq.s32.totalorder %s33, 0
      %p248 = por %p246, %p247
      %p249 = scmp.ne.s32.totalorder %s235, %s236
      %p250 = scmp.eq.s32.totalorder %s34, 3
      %p251 = por %p249, %p250
      %p253 = scmp.ne.s32.totalorder %s236, %s252
      %p254 = scmp.eq.s32.totalorder %s34, 0
      %p255 = por %p253, %p254
      %s256 = ssub.s32 %s36, %s43
      %p257 = scmp.eq.s32.totalorder %s256, 0
      %s259 = sadd.s32 %s258, 1
      %s260 = scalar_select %p257, %s258, %s259
      %p263 = pneg %p257
      %p264 = scmp.eq.s32.totalorder %s28, 3
      %p265 = por %p263, %p264
      %p266 = scmp.ne.s32.totalorder %s258, %s261
      %p267 = scmp.eq.s32.totalorder %s28, 0
      %p268 = por %p266, %p267
      %p269 = scmp.ne.s32.totalorder %s258, %s261
      %p270 = scmp.eq.s32.totalorder %s33, 3
      %p271 = por %p269, %p270
      %p272 = scmp.ne.s32.totalorder %s261, %s262
      %p273 = scmp.eq.s32.totalorder %s33, 0
      %p274 = por %p272, %p273
      %p275 = scmp.ne.s32.totalorder %s261, %s262
      %p276 = scmp.eq.s32.totalorder %s34, 3
      %p277 = por %p275, %p276
      %p279 = scmp.ne.s32.totalorder %s262, %s278
      %p280 = scmp.eq.s32.totalorder %s34, 0
      %p281 = por %p279, %p280
      %s282 = ssub.s32 %s36, %s43
      %p283 = scmp.eq.s32.totalorder %s282, 0
      %s285 = sadd.s32 %s284, 1
      %s286 = scalar_select %p283, %s284, %s285
      %p289 = pneg %p283
      %p290 = scmp.eq.s32.totalorder %s28, 3
      %p291 = por %p289, %p290
      %p292 = scmp.ne.s32.totalorder %s284, %s287
      %p293 = scmp.eq.s32.totalorder %s28, 0
      %p294 = por %p292, %p293
      %p295 = scmp.ne.s32.totalorder %s284, %s287
      %p296 = scmp.eq.s32.totalorder %s33, 3
      %p297 = por %p295, %p296
      %p298 = scmp.ne.s32.totalorder %s287, %s288
      %p299 = scmp.eq.s32.totalorder %s33, 0
      %p300 = por %p298, %p299
      %p301 = scmp.ne.s32.totalorder %s287, %s288
      %p302 = scmp.eq.s32.totalorder %s34, 3
      %p303 = por %p301, %p302
      %p305 = scmp.ne.s32.totalorder %s288, %s304
      %p306 = scmp.eq.s32.totalorder %s34, 0
      %p307 = por %p305, %p306
      %s308 = ssub.s32 %s36, %s43
      %p309 = scmp.eq.s32.totalorder %s308, 0
      %s311 = sadd.s32 %s310, 1
      %s312 = scalar_select %p309, %s310, %s311
      %p315 = pneg %p309
      %p316 = scmp.eq.s32.totalorder %s28, 3
      %p317 = por %p315, %p316
      %p318 = scmp.ne.s32.totalorder %s310, %s313
      %p319 = scmp.eq.s32.totalorder %s28, 0
      %p320 = por %p318, %p319
      %p321 = scmp.ne.s32.totalorder %s310, %s313
      %p322 = scmp.eq.s32.totalorder %s33, 3
      %p323 = por %p321, %p322
      %p324 = scmp.ne.s32.totalorder %s313, %s314
      %p325 = scmp.eq.s32.totalorder %s33, 0
      %p326 = por %p324, %p325
      %p327 = scmp.ne.s32.totalorder %s313, %s314
      %p328 = scmp.eq.s32.totalorder %s34, 3
      %p329 = por %p327, %p328
      %p331 = scmp.ne.s32.totalorder %s314, %s330
      %p332 = scmp.eq.s32.totalorder %s34, 0
      %p333 = por %p331, %p332
      %s334 = ssub.s32 %s36, %s43
      %p335 = scmp.eq.s32.totalorder %s334, 0
      %s337 = sadd.s32 %s336, 1
      %s338 = scalar_select %p335, %s336, %s337
      %p341 = pneg %p335
      %p342 = scmp.eq.s32.totalorder %s28, 3
      %p343 = por %p341, %p342
      %p344 = scmp.ne.s32.totalorder %s336, %s339
      %p345 = scmp.eq.s32.totalorder %s28, 0
      %p346 = por %p344, %p345
      %p347 = scmp.ne.s32.totalorder %s336, %s339
      %p348 = scmp.eq.s32.totalorder %s33, 3
      %p349 = por %p347, %p348
      %p350 = scmp.ne.s32.totalorder %s339, %s340
      %p351 = scmp.eq.s32.totalorder %s33, 0
      %p352 = por %p350, %p351
      %p353 = scmp.ne.s32.totalorder %s339, %s340
      %p354 = scmp.eq.s32.totalorder %s34, 3
      %p355 = por %p353, %p354
      %p357 = scmp.ne.s32.totalorder %s340, %s356
      %p358 = scmp.eq.s32.totalorder %s34, 0
      %p359 = por %p357, %p358
      %s360 = ssub.s32 %s36, %s43
      %p361 = scmp.eq.s32.totalorder %s360, 0
      %s363 = sadd.s32 %s362, 1
      %s364 = scalar_select %p361, %s362, %s363
      %p367 = pneg %p361
      %p368 = scmp.eq.s32.totalorder %s28, 3
      %p369 = por %p367, %p368
      %p370 = scmp.ne.s32.totalorder %s362, %s365
      %p371 = scmp.eq.s32.totalorder %s28, 0
      %p372 = por %p370, %p371
      %p373 = scmp.ne.s32.totalorder %s362, %s365
      %p374 = scmp.eq.s32.totalorder %s33, 3
      %p375 = por %p373, %p374
      %p376 = scmp.ne.s32.totalorder %s365, %s366
      %p377 = scmp.eq.s32.totalorder %s33, 0
      %p378 = por %p376, %p377
      %p379 = scmp.ne.s32.totalorder %s365, %s366
      %p380 = scmp.eq.s32.totalorder %s34, 3
      %p381 = por %p379, %p380
      %p383 = scmp.ne.s32.totalorder %s366, %s382
      %p384 = scmp.eq.s32.totalorder %s34, 0
      %p385 = por %p383, %p384
      %s386 = ssub.s32 %s35, %s47
      %p387 = scmp.eq.s32.totalorder %s386, 0
      %s389 = sadd.s32 %s388, 1
      %s390 = scalar_select %p387, %s388, %s389
      %p393 = pneg %p387
      %p394 = scmp.eq.s32.totalorder %s28, 3
      %p395 = por %p393, %p394
      %p396 = scmp.ne.s32.totalorder %s388, %s391
      %p397 = scmp.eq.s32.totalorder %s28, 0
      %p398 = por %p396, %p397
      %p399 = scmp.ne.s32.totalorder %s388, %s391
      %p400 = scmp.eq.s32.totalorder %s33, 3
      %p401 = por %p399, %p400
      %p402 = scmp.ne.s32.totalorder %s391, %s392
      %p403 = scmp.eq.s32.totalorder %s33, 0
      %p404 = por %p402, %p403
      %p405 = scmp.ne.s32.totalorder %s391, %s392
      %p406 = scmp.eq.s32.totalorder %s34, 3
      %p407 = por %p405, %p406
      %p409 = scmp.ne.s32.totalorder %s392, %s408
      %p410 = scmp.eq.s32.totalorder %s34, 0
      %p411 = por %p409, %p410
      %p412 = scmp.le.s32.totalorder 1, %s28
      %p413 = scmp.lt.s32.totalorder %s28, 5
      %p414 = pnand %p412, %p413
      %p415 = pneg %p414
      // Predicated region
      $region9: #{tpu_custom_call.1} parent=5 // pred_check
        _
      $region10: #{tpu_custom_call.1} parent=5 // pred_check_branch
        %417 = sbr.rel (%p414) target = $region12
      $region11: #{tpu_custom_call.1} parent=5 // pred_region
        %s418 = ssub.s32 %s28, 1
      $region12: #{tpu_custom_call.1} parent=5 // pred_fallthru
        _
      %p419 = scmp.lt.s32.totalorder %s28, 4
      // Predicated region
      $region13: #{tpu_custom_call.1} parent=5 // pred_check
        %p420 = pneg %p419
      $region14: #{tpu_custom_call.1} parent=5 // pred_check_branch
        %422 = sbr.rel (%p420) target = $region16
      $region15: #{tpu_custom_call.1} parent=5 // pred_region
        // Predicated region
        $region17: #{tpu_custom_call.1} parent=15 // pred_check
          %p423 = pneg %p60
        $region18: #{tpu_custom_call.1} parent=15 // pred_check_branch
          %425 = sbr.rel (%p423) target = $region20
        $region19: #{tpu_custom_call.1} parent=15 // pred_region
          %s426 = sand.u32 %s50, 1
          %s427 = scalar_lea.sflag [#allocation3], %s426
          %s428 = sand.u32 %s50, 1
          %s429 = smul.addr %s428, 8
          %s430 = scalar_lea.vmem [#allocation2], %s429
          %s432 = ssub.s32 128, 128
          %433 = vsyncadd %s427, %s432
          %s434 = smul.addr %s35, 128
          %s435 = scalar_lea.hbm %s0, %s434
          %s437 = sshll.u32 %s430, 4
          %s438 = int_to_ptr.vmem [resolvable:$true] %s437
          %440 = dma.hbm_to_vmem [thread:$0]  %s435, 128, %s438, %s427
        $region20: #{tpu_custom_call.1} parent=15 // pred_fallthru
          _
        // Predicated region
        $region21: #{tpu_custom_call.1} parent=15 // pred_check
          %p441 = pneg %p86
        $region22: #{tpu_custom_call.1} parent=15 // pred_check_branch
          %443 = sbr.rel (%p441) target = $region24
        $region23: #{tpu_custom_call.1} parent=15 // pred_region
          %s444 = sand.u32 %s76, 1
          %s445 = scalar_lea.sflag [#allocation6], %s444
          %s446 = sand.u32 %s76, 1
          %s447 = scalar_lea.vmem [#allocation5], %s446
          %s449 = ssub.s32 16, 16
          %450 = vsyncadd %s445, %s449
          %s451 = smul.addr %s36, 16
          %s452 = scalar_lea.hbm %s1, %s451
          %s454 = sshll.u32 %s447, 4
          %s455 = int_to_ptr.vmem [resolvable:$true] %s454
          %457 = dma.hbm_to_vmem [thread:$0]  %s452, 16, %s455, %s445
        $region24: #{tpu_custom_call.1} parent=15 // pred_fallthru
          _
        // Predicated region
        $region25: #{tpu_custom_call.1} parent=15 // pred_check
          %p458 = pneg %p112
        $region26: #{tpu_custom_call.1} parent=15 // pred_check_branch
          %460 = sbr.rel (%p458) target = $region28
        $region27: #{tpu_custom_call.1} parent=15 // pred_region
          %p461 = scmp.lt.s32.totalorder %s36, 1
          %s462 = scalar_select %p461, %s36, 1
          %s463 = scalar_lea.vmem %s2, %s462
        $region28: #{tpu_custom_call.1} parent=15 // pred_fallthru
          _
        // Predicated region
        $region29: #{tpu_custom_call.1} parent=15 // pred_check
          %p464 = pneg %p138
        $region30: #{tpu_custom_call.1} parent=15 // pred_check_branch
          %466 = sbr.rel (%p464) target = $region32
        $region31: #{tpu_custom_call.1} parent=15 // pred_region
          %p467 = scmp.lt.s32.totalorder %s36, 1
          %s468 = scalar_select %p467, %s36, 1
          %s469 = smul.addr %s468, 4
          %s470 = smul.addr %s469, 4
          %s471 = scalar_lea.vmem %s3, %s470
        $region32: #{tpu_custom_call.1} parent=15 // pred_fallthru
          _
        // Predicated region
        $region33: #{tpu_custom_call.1} parent=15 // pred_check
          %p472 = pneg %p164
        $region34: #{tpu_custom_call.1} parent=15 // pred_check_branch
          %474 = sbr.rel (%p472) target = $region36
        $region35: #{tpu_custom_call.1} parent=15 // pred_region
          %p475 = scmp.lt.s32.totalorder %s36, 1
          %s476 = scalar_select %p475, %s36, 1
          %s477 = scalar_lea.vmem %s4, %s476
        $region36: #{tpu_custom_call.1} parent=15 // pred_fallthru
          _
        // Predicated region
        $region37: #{tpu_custom_call.1} parent=15 // pred_check
          %p478 = pneg %p190
        $region38: #{tpu_custom_call.1} parent=15 // pred_check_branch
          %480 = sbr.rel (%p478) target = $region40
        $region39: #{tpu_custom_call.1} parent=15 // pred_region
          %p481 = scmp.lt.s32.totalorder %s36, 1
          %s482 = scalar_select %p481, %s36, 1
          %s483 = smul.addr %s482, 4
          %s484 = smul.addr %s483, 4
          %s485 = scalar_lea.vmem %s5, %s484
        $region40: #{tpu_custom_call.1} parent=15 // pred_fallthru
          _
        // Predicated region
        $region41: #{tpu_custom_call.1} parent=15 // pred_check
          %p486 = pneg %p216
        $region42: #{tpu_custom_call.1} parent=15 // pred_check_branch
          %488 = sbr.rel (%p486) target = $region44
        $region43: #{tpu_custom_call.1} parent=15 // pred_region
          %p489 = scmp.lt.s32.totalorder %s36, 1
          %s490 = scalar_select %p489, %s36, 1
          %s491 = scalar_lea.vmem %s6, %s490
        $region44: #{tpu_custom_call.1} parent=15 // pred_fallthru
          _
        // Predicated region
        $region45: #{tpu_custom_call.1} parent=15 // pred_check
          %p492 = pneg %p242
        $region46: #{tpu_custom_call.1} parent=15 // pred_check_branch
          %494 = sbr.rel (%p492) target = $region48
        $region47: #{tpu_custom_call.1} parent=15 // pred_region
          %p495 = scmp.lt.s32.totalorder %s36, 1
          %s496 = scalar_select %p495, %s36, 1
          %s497 = scalar_lea.vmem %s7, %s496
        $region48: #{tpu_custom_call.1} parent=15 // pred_fallthru
          _
        // Predicated region
        $region49: #{tpu_custom_call.1} parent=15 // pred_check
          %p498 = pneg %p268
        $region50: #{tpu_custom_call.1} parent=15 // pred_check_branch
          %500 = sbr.rel (%p498) target = $region52
        $region51: #{tpu_custom_call.1} parent=15 // pred_region
          %p501 = scmp.lt.s32.totalorder %s36, 1
          %s502 = scalar_select %p501, %s36, 1
          %s503 = scalar_lea.vmem %s8, %s502
        $region52: #{tpu_custom_call.1} parent=15 // pred_fallthru
          _
        // Predicated region
        $region53: #{tpu_custom_call.1} parent=15 // pred_check
          %p504 = pneg %p294
        $region54: #{tpu_custom_call.1} parent=15 // pred_check_branch
          %506 = sbr.rel (%p504) target = $region56
        $region55: #{tpu_custom_call.1} parent=15 // pred_region
          %p507 = scmp.lt.s32.totalorder %s36, 1
          %s508 = scalar_select %p507, %s36, 1
          %s509 = smul.addr %s508, 4
          %s510 = smul.addr %s509, 4
          %s511 = scalar_lea.vmem %s9, %s510
        $region56: #{tpu_custom_call.1} parent=15 // pred_fallthru
          _
        // Predicated region
        $region57: #{tpu_custom_call.1} parent=15 // pred_check
          %p512 = pneg %p320
        $region58: #{tpu_custom_call.1} parent=15 // pred_check_branch
          %514 = sbr.rel (%p512) target = $region60
        $region59: #{tpu_custom_call.1} parent=15 // pred_region
          %p515 = scmp.lt.s32.totalorder %s36, 1
          %s516 = scalar_select %p515, %s36, 1
          %s517 = scalar_lea.vmem %s10, %s516
        $region60: #{tpu_custom_call.1} parent=15 // pred_fallthru
          _
        // Predicated region
        $region61: #{tpu_custom_call.1} parent=15 // pred_check
          %p518 = pneg %p346
        $region62: #{tpu_custom_call.1} parent=15 // pred_check_branch
          %520 = sbr.rel (%p518) target = $region64
        $region63: #{tpu_custom_call.1} parent=15 // pred_region
          %p521 = scmp.lt.s32.totalorder %s36, 1
          %s522 = scalar_select %p521, %s36, 1
          %s523 = smul.addr %s522, 8
          %s524 = smul.addr %s523, 4
          %s525 = scalar_lea.vmem %s11, %s524
        $region64: #{tpu_custom_call.1} parent=15 // pred_fallthru
          _
        // Predicated region
        $region65: #{tpu_custom_call.1} parent=15 // pred_check
          %p526 = pneg %p372
        $region66: #{tpu_custom_call.1} parent=15 // pred_check_branch
          %528 = sbr.rel (%p526) target = $region68
        $region67: #{tpu_custom_call.1} parent=15 // pred_region
          %p529 = scmp.lt.s32.totalorder %s36, 1
          %s530 = scalar_select %p529, %s36, 1
          %s531 = scalar_lea.vmem %s12, %s530
        $region68: #{tpu_custom_call.1} parent=15 // pred_fallthru
          _
      $region16: #{tpu_custom_call.1} parent=5 // pred_fallthru
        _
      %p532 = scmp.le.s32.totalorder 1, %s28
      %p533 = scmp.lt.s32.totalorder %s28, 5
      %p534 = pnand %p532, %p533
      %p535 = pneg %p534
      // Predicated region
      $region69: #{tpu_custom_call.1} parent=5 // pred_check
        _
      $region70: #{tpu_custom_call.1} parent=5 // pred_check_branch
        %537 = sbr.rel (%p534) target = $region72
      $region71: #{tpu_custom_call.1} parent=5 // pred_region
        %s538 = ssub.s32 %s28, 1
        %s539 = sand.u32 %s53, 1
        %s540 = scalar_lea.sflag [#allocation3], %s539
        %s541 = sand.u32 %s53, 1
        %s542 = smul.addr %s541, 8
        %s543 = scalar_lea.vmem [#allocation2], %s542
        // Predicated region
        $region73: #{tpu_custom_call.1} parent=71 // pred_check
          %p544 = pneg %p66
        $region74: #{tpu_custom_call.1} parent=71 // pred_check_branch
          %546 = sbr.rel (%p544) target = $region76
        $region75: #{tpu_custom_call.1} parent=71 // pred_region
          %547 = dma.done %s540, 128
        $region76: #{tpu_custom_call.1} parent=71 // pred_fallthru
          _
        %s548 = sand.u32 %s79, 1
        %s549 = scalar_lea.sflag [#allocation6], %s548
        %s550 = sand.u32 %s79, 1
        %s551 = scalar_lea.vmem [#allocation5], %s550
        // Predicated region
        $region77: #{tpu_custom_call.1} parent=71 // pred_check
          %p552 = pneg %p92
        $region78: #{tpu_custom_call.1} parent=71 // pred_check_branch
          %554 = sbr.rel (%p552) target = $region80
        $region79: #{tpu_custom_call.1} parent=71 // pred_region
          %555 = dma.done %s549, 16
        $region80: #{tpu_custom_call.1} parent=71 // pred_fallthru
          _
        %s556 = sand.u32 %s53, 1
        %s557 = scalar_lea.sflag [#allocation3], %s556
        %s558 = sand.u32 %s53, 1
        %s559 = smul.addr %s558, 8
        %s560 = scalar_lea.vmem [#allocation2], %s559
        %p561 = pneg %p66
        %p562 = pneg %p63
        %s563 = sand.u32 %s79, 1
        %s564 = scalar_lea.sflag [#allocation6], %s563
        %s565 = sand.u32 %s79, 1
        %s566 = scalar_lea.vmem [#allocation5], %s565
        %p567 = pneg %p92
        %p568 = pneg %p89
        %p569 = scmp.lt.s32.totalorder %s38, 1
        %s570 = scalar_select %p569, %s38, 1
        %s571 = scalar_lea.vmem %s2, %s570
        %p572 = pneg %p118
        %p573 = pneg %p115
        %p574 = scmp.lt.s32.totalorder %s38, 1
        %s575 = scalar_select %p574, %s38, 1
        %s576 = smul.addr %s575, 4
        %s577 = smul.addr %s576, 4
        %s578 = scalar_lea.vmem %s3, %s577
        %p579 = pneg %p144
        %p580 = pneg %p141
        %p581 = scmp.lt.s32.totalorder %s38, 1
        %s582 = scalar_select %p581, %s38, 1
        %s583 = scalar_lea.vmem %s4, %s582
        %p584 = pneg %p170
        %p585 = pneg %p167
        %p586 = scmp.lt.s32.totalorder %s38, 1
        %s587 = scalar_select %p586, %s38, 1
        %s588 = smul.addr %s587, 4
        %s589 = smul.addr %s588, 4
        %s590 = scalar_lea.vmem %s5, %s589
        %p591 = pneg %p196
        %p592 = pneg %p193
        %p593 = scmp.lt.s32.totalorder %s38, 1
        %s594 = scalar_select %p593, %s38, 1
        %s595 = scalar_lea.vmem %s6, %s594
        %p596 = pneg %p222
        %p597 = pneg %p219
        %p598 = scmp.lt.s32.totalorder %s38, 1
        %s599 = scalar_select %p598, %s38, 1
        %s600 = scalar_lea.vmem %s7, %s599
        %p601 = pneg %p248
        %p602 = pneg %p245
        %p603 = scmp.lt.s32.totalorder %s38, 1
        %s604 = scalar_select %p603, %s38, 1
        %s605 = scalar_lea.vmem %s8, %s604
        %p606 = pneg %p274
        %p607 = pneg %p271
        %p608 = scmp.lt.s32.totalorder %s38, 1
        %s609 = scalar_select %p608, %s38, 1
        %s610 = smul.addr %s609, 4
        %s611 = smul.addr %s610, 4
        %s612 = scalar_lea.vmem %s9, %s611
        %p613 = pneg %p300
        %p614 = pneg %p297
        %p615 = scmp.lt.s32.totalorder %s38, 1
        %s616 = scalar_select %p615, %s38, 1
        %s617 = scalar_lea.vmem %s10, %s616
        %p618 = pneg %p326
        %p619 = pneg %p323
        %p620 = scmp.lt.s32.totalorder %s38, 1
        %s621 = scalar_select %p620, %s38, 1
        %s622 = smul.addr %s621, 8
        %s623 = smul.addr %s622, 4
        %s624 = scalar_lea.vmem %s11, %s623
        %p625 = pneg %p352
        %p626 = pneg %p349
        %p627 = scmp.lt.s32.totalorder %s38, 1
        %s628 = scalar_select %p627, %s38, 1
        %s629 = scalar_lea.vmem %s12, %s628
        %p630 = pneg %p378
        %p631 = pneg %p375
        %p632 = pneg %p404
        %p633 = pneg %p401
        %s634 = sand.u32 %s391, 1
        %s635 = scalar_lea.sflag [#allocation4], %s634
        %s636 = sand.u32 %s391, 1
        %s637 = smul.addr %s636, 8
        %s638 = scalar_lea.vmem [#allocation7], %s637
        %p639 = scmp.lt.s32.totalorder %s38, 1
        %s640 = scalar_select %p639, %s38, 1
        %s641 = scalar_lea.vmem %s2, %s640
        %p642 = scmp.lt.s32.totalorder %s38, 1
        %s643 = scalar_select %p642, %s38, 1
        %s644 = smul.addr %s643, 4
        %s645 = smul.addr %s644, 4
        %s646 = scalar_lea.vmem %s3, %s645
        %p647 = scmp.lt.s32.totalorder %s38, 1
        %s648 = scalar_select %p647, %s38, 1
        %s649 = scalar_lea.vmem %s4, %s648
        %p650 = scmp.lt.s32.totalorder %s38, 1
        %s651 = scalar_select %p650, %s38, 1
        %s652 = smul.addr %s651, 4
        %s653 = smul.addr %s652, 4
        %s654 = scalar_lea.vmem %s5, %s653
        %p655 = scmp.lt.s32.totalorder %s38, 1
        %s656 = scalar_select %p655, %s38, 1
        %s657 = scalar_lea.vmem %s6, %s656
        %p658 = scmp.lt.s32.totalorder %s38, 1
        %s659 = scalar_select %p658, %s38, 1
        %s660 = scalar_lea.vmem %s7, %s659
        %p661 = scmp.lt.s32.totalorder %s38, 1
        %s662 = scalar_select %p661, %s38, 1
        %s663 = scalar_lea.vmem %s8, %s662
        %p664 = scmp.lt.s32.totalorder %s38, 1
        %s665 = scalar_select %p664, %s38, 1
        %s666 = smul.addr %s665, 4
        %s667 = smul.addr %s666, 4
        %s668 = scalar_lea.vmem %s9, %s667
        %p669 = scmp.lt.s32.totalorder %s38, 1
        %s670 = scalar_select %p669, %s38, 1
        %s671 = scalar_lea.vmem %s10, %s670
        %p672 = scmp.lt.s32.totalorder %s38, 1
        %s673 = scalar_select %p672, %s38, 1
        %s674 = smul.addr %s673, 8
        %s675 = smul.addr %s674, 4
        %s676 = scalar_lea.vmem %s11, %s675
        %p677 = scmp.lt.s32.totalorder %s38, 1
        %s678 = scalar_select %p677, %s38, 1
        %s679 = scalar_lea.vmem %s12, %s678
        %p681 = scmp.eq.s32.totalorder %s38, 0
        // Predicated region
        $region81: #{tpu_custom_call.1} parent=71 // pred_check
          %p682 = pneg %p681
        $region82: #{tpu_custom_call.1} parent=71 // pred_check_branch
          %684 = sbr.rel (%p682) target = $region84
        $region83: #{tpu_custom_call.1} parent=71 // pred_region
          %v685 = vld [vmem:[%s543] sm:$0xff]
          %vm686 = vcmask 261120
          %687 = vst.msk [vmem:[%s638] sm:$0xff] %vm686, %v685
        $region84: #{tpu_custom_call.1} parent=71 // pred_fallthru
          _
        %v688 = vld [vmem:[%s638] sm:$0xff]
        %v689 = vld [vmem:[%s551] sm:$0x1]
        %v690 = vld [vmem:[%s641] sm:$0x1]
        %vm691 = vcmask 261120
        %v692 = vsel %vm691, %v688, 0.0
        %693 = vadd.xlane.f32.xlu0 %v692
        %v694 = vpop.xlane.xlu0 %693
        %v695 = vrcp.pop 32.0
        %v696 = vmul.f32 %v694, %v695
        %v697 = vsub.f32 %v688, %v696
        %v698 = vmul.f32 %v697, %v697
        %v699 = vsel %vm691, %v698, 0.0
        %700 = vadd.xlane.f32.xlu0 %v699
        %v701 = vpop.xlane.xlu0 %700
        %v702 = vmul.f32 %v701, %v695
        %v703 = vadd.f32 %v702, 1e-05
        %v704 = vrsqrt.pop %v703
        %v705 = vmul.f32 %v697, %v704
        %v707 = vlaneseq
        %v708 = vshrl.u32 %v707, 7
        %v709 = vsub.s32 0, %v708
        %v710 = vrot.slane %v689, %v709
        %v712 = vmul.f32 %v705, %v710
        %v714 = vlaneseq
        %v715 = vshrl.u32 %v714, 7
        %v716 = vsub.s32 0, %v715
        %v717 = vrot.slane %v690, %v716
        %v719 = vadd.f32 %v712, %v717
        %v720 = vpack.c.bf16 %v719, %v719
        %v721 = vld [vmem:[%s646] sm:$0xf]
        %v722 = vld [vmem:[%s646 + $0x4] sm:$0xf]
        %v723 = vld [vmem:[%s646 + $0x8] sm:$0xf]
        %v724 = vld [vmem:[%s646 + $0xc] sm:$0xf]
        %v725 = vld [vmem:[%s649] sm:$0x1]
        %v727 = vlaneseq
        %v728 = vshrl.u32 %v727, 7
        %v729 = vsub.s32 0, %v728
        %v730 = vrot.slane %v725, %v729
        %v736 = vunpack.c.l.b16 %v721
        %v737 = vunpack.c.l.b16 %v722
        %v738 = vunpack.c.l.b16 %v723
        %v739 = vunpack.c.l.b16 %v724
        %v740 = vpack.c.b16 %v737, %v736
        %v741 = vpack.c.b16 %v739, %v738
        %v745 = vsel %vm691, %v720, 0
        %747 = vmatprep.subr.bf16.mxu0 0
        %748 = vmatpush1.bf16.msra.mxu0 0
        %749 = vmatprep.subr.bf16.mxu0 0
        %750 = vmatpush1.bf16.msra.mxu0 0
        %751 = vmatprep.subr.bf16.mxu0 0
        %752 = vmatpush1.bf16.msra.mxu0 0
        %753 = vmatprep.subr.bf16.mxu0 0
        %754 = vmatpush1.bf16.msra.mxu0 0
        %755 = vmatprep.subr.bf16.mxu0 0
        %756 = vmatpush1.bf16.msra.mxu0 0
        %757 = vmatprep.subr.bf16.mxu0 0
        %758 = vmatpush1.bf16.msra.mxu0 0
        %759 = vmatprep.subr.bf16.mxu0 0
        %760 = vmatpush1.bf16.msra.mxu0 %v741
        %761 = vmatprep.subr.bf16.mxu0 0
        %762 = vmatpush1.bf16.msra.mxu0 %v740
        %763 = vmatprep.subr.bf16.mxu0 0
        %764 = vmatpush2.bf16.msra.mxu0 0
        %765 = vmatprep.subr.bf16.mxu0 0
        %766 = vmatpush2.bf16.msra.mxu0 0
        %767 = vmatprep.subr.bf16.mxu0 0
        %768 = vmatpush2.bf16.msra.mxu0 0
        %769 = vmatprep.subr.bf16.mxu0 0
        %770 = vmatpush2.bf16.msra.mxu0 0
        %771 = vmatprep.subr.bf16.mxu0 0
        %772 = vmatpush2.bf16.msra.mxu0 0
        %773 = vmatprep.subr.bf16.mxu0 0
        %774 = vmatpush2.bf16.msra.mxu0 0
        %775 = vmatprep.subr.bf16.mxu0 0
        %776 = vmatpush2.bf16.msra.mxu0 0
        %777 = vmatprep.subr.bf16.mxu0 0
        %778 = vmatpush2.bf16.msra.mxu0 0
        %779 = vmatprep.mubr.bf16.mxu0 0
        %780 = vmatmul.mubr.bf16.gmra.mxu0 %v745
        %v781 = vpop.f32.mrf.mxu0
        %v782 = vadd.f32 %v730, %v781
        %v783 = vpop.f32.mrf.mxu0
        %v784 = vpop.f32.mrf.mxu0
        %v785 = vpop.f32.mrf.mxu0
        %786 = vdwg.mxu0
        %v787 = vld [vmem:[%s654] sm:$0xf]
        %v788 = vld [vmem:[%s654 + $0x4] sm:$0xf]
        %v789 = vld [vmem:[%s654 + $0x8] sm:$0xf]
        %v790 = vld [vmem:[%s654 + $0xc] sm:$0xf]
        %v791 = vpack.c.bf16 %v782, %v782
        %793 = vrot.lane.b32.xlu0 %v791, 96
        %v794 = vpop.permute.xlu0 %793
        %vm795 = vcmask 64512
        %v797 = vsel %vm795, %v791, 0
        %v800 = vsel %vm795, %v794, 0
        %802 = vmatprep.subr.bf16.mxu0 0
        %803 = vmatpush1.bf16.xpose.msra.mxu0 0
        %804 = vmatprep.subr.bf16.mxu0 0
        %805 = vmatpush1.bf16.xpose.msra.mxu0 0
        %806 = vmatprep.subr.bf16.mxu0 0
        %807 = vmatpush1.bf16.xpose.msra.mxu0 0
        %808 = vmatprep.subr.bf16.mxu0 0
        %809 = vmatpush1.bf16.xpose.msra.mxu0 0
        %810 = vmatprep.subr.bf16.mxu0 0
        %811 = vmatpush1.bf16.xpose.msra.mxu0 0
        %812 = vmatprep.subr.bf16.mxu0 0
        %813 = vmatpush1.bf16.xpose.msra.mxu0 0
        %814 = vmatprep.subr.bf16.mxu0 0
        %815 = vmatpush1.bf16.xpose.msra.mxu0 0
        %816 = vmatprep.subr.bf16.mxu0 0
        %817 = vmatpush1.bf16.xpose.msra.mxu0 %v800
        %818 = vmatprep.subr.bf16.mxu0 0
        %819 = vmatpush2.bf16.xpose.msra.mxu0 0
        %820 = vmatprep.subr.bf16.mxu0 0
        %821 = vmatpush2.bf16.xpose.msra.mxu0 0
        %822 = vmatprep.subr.bf16.mxu0 0
        %823 = vmatpush2.bf16.xpose.msra.mxu0 0
        %824 = vmatprep.subr.bf16.mxu0 0
        %825 = vmatpush2.bf16.xpose.msra.mxu0 0
        %826 = vmatprep.subr.bf16.mxu0 0
        %827 = vmatpush2.bf16.xpose.msra.mxu0 0
        %828 = vmatprep.subr.bf16.mxu0 0
        %829 = vmatpush2.bf16.xpose.msra.mxu0 0
        %830 = vmatprep.subr.bf16.mxu0 0
        %831 = vmatpush2.bf16.xpose.msra.mxu0 0
        %832 = vmatprep.subr.bf16.mxu0 0
        %833 = vmatpush2.bf16.xpose.msra.mxu0 0
        %834 = vmatprep.mubr.bf16.mxu0 0
        %835 = vmatmul.mubr.bf16.gmra.mxu0 %v797
        %v836 = vpop.f32.mrf.mxu0
        %v837 = vadd.f32 0.0, %v836
        %v838 = vpop.f32.mrf.mxu0
        %v839 = vpop.f32.mrf.mxu0
        %v840 = vpop.f32.mrf.mxu0
        %841 = vdwg.mxu0
        %v842 = vsel %vm795, %v837, -inf
        %843 = vmax.xlane.f32.xlu0 %v842
        %v844 = vpop.xlane.xlu0 %843
        %v845 = vsub.f32 %v837, %v844
        %v846 = vmul.f32 %v845, 1.442695
        %v847 = vpow.pop %v846
        %v848 = vsel %vm795, %v847, 0.0
        %849 = vadd.xlane.f32.xlu0 %v848
        %v850 = vpop.xlane.xlu0 %849
        %v851 = vrcp.pop %v850
        %v852 = vmul.f32 %v847, %v851
        %v853 = vpack.c.bf16 %v852, %v852
        %854 = vrot.lane.b32.xlu0 %v791, 64
        %v855 = vpop.permute.xlu0 %854
        %v857 = vsel %vm795, %v853, 0
        %vm859 = vcmask 1043456
        %v861 = vsel %vm859, %v855, 0
        %863 = vmatprep.subr.bf16.mxu0 0
        %864 = vmatpush1.bf16.msra.mxu0 0
        %865 = vmatprep.subr.bf16.mxu0 0
        %866 = vmatpush1.bf16.msra.mxu0 0
        %867 = vmatprep.subr.bf16.mxu0 0
        %868 = vmatpush1.bf16.msra.mxu0 0
        %869 = vmatprep.subr.bf16.mxu0 0
        %870 = vmatpush1.bf16.msra.mxu0 0
        %871 = vmatprep.subr.bf16.mxu0 0
        %872 = vmatpush1.bf16.msra.mxu0 0
        %873 = vmatprep.subr.bf16.mxu0 0
        %874 = vmatpush1.bf16.msra.mxu0 0
        %875 = vmatprep.subr.bf16.mxu0 0
        %876 = vmatpush1.bf16.msra.mxu0 0
        %877 = vmatprep.subr.bf16.mxu0 0
        %878 = vmatpush1.bf16.msra.mxu0 %v861
        %879 = vmatprep.subr.bf16.mxu0 0
        %880 = vmatpush2.bf16.msra.mxu0 0
        %881 = vmatprep.subr.bf16.mxu0 0
        %882 = vmatpush2.bf16.msra.mxu0 0
        %883 = vmatprep.subr.bf16.mxu0 0
        %884 = vmatpush2.bf16.msra.mxu0 0
        %885 = vmatprep.subr.bf16.mxu0 0
        %886 = vmatpush2.bf16.msra.mxu0 0
        %887 = vmatprep.subr.bf16.mxu0 0
        %888 = vmatpush2.bf16.msra.mxu0 0
        %889 = vmatprep.subr.bf16.mxu0 0
        %890 = vmatpush2.bf16.msra.mxu0 0
        %891 = vmatprep.subr.bf16.mxu0 0
        %892 = vmatpush2.bf16.msra.mxu0 0
        %893 = vmatprep.subr.bf16.mxu0 0
        %894 = vmatpush2.bf16.msra.mxu0 0
        %895 = vmatprep.mubr.bf16.mxu0 0
        %896 = vmatmul.mubr.bf16.gmra.mxu0 %v857
        %v897 = vpop.f32.mrf.mxu0
        %v898 = vadd.f32 0.0, %v897
        %v899 = vpop.f32.mrf.mxu0
        %v900 = vpop.f32.mrf.mxu0
        %v901 = vpop.f32.mrf.mxu0
        %902 = vdwg.mxu0
        %v903 = vpack.c.bf16 %v898, %v898
        %904 = vrot.lane.b32.xlu0 %v791, 120
        %v905 = vpop.permute.xlu0 %904
        %906 = vrot.lane.b32.xlu0 %v791, 88
        %v907 = vpop.permute.xlu0 %906
        %v909 = vsel %vm795, %v905, 0
        %v912 = vsel %vm795, %v907, 0
        %914 = vmatprep.subr.bf16.mxu0 0
        %915 = vmatpush1.bf16.xpose.msra.mxu0 0
        %916 = vmatprep.subr.bf16.mxu0 0
        %917 = vmatpush1.bf16.xpose.msra.mxu0 0
        %918 = vmatprep.subr.bf16.mxu0 0
        %919 = vmatpush1.bf16.xpose.msra.mxu0 0
        %920 = vmatprep.subr.bf16.mxu0 0
        %921 = vmatpush1.bf16.xpose.msra.mxu0 0
        %922 = vmatprep.subr.bf16.mxu0 0
        %923 = vmatpush1.bf16.xpose.msra.mxu0 0
        %924 = vmatprep.subr.bf16.mxu0 0
        %925 = vmatpush1.bf16.xpose.msra.mxu0 0
        %926 = vmatprep.subr.bf16.mxu0 0
        %927 = vmatpush1.bf16.xpose.msra.mxu0 0
        %928 = vmatprep.subr.bf16.mxu0 0
        %929 = vmatpush1.bf16.xpose.msra.mxu0 %v912
        %930 = vmatprep.subr.bf16.mxu0 0
        %931 = vmatpush2.bf16.xpose.msra.mxu0 0
        %932 = vmatprep.subr.bf16.mxu0 0
        %933 = vmatpush2.bf16.xpose.msra.mxu0 0
        %934 = vmatprep.subr.bf16.mxu0 0
        %935 = vmatpush2.bf16.xpose.msra.mxu0 0
        %936 = vmatprep.subr.bf16.mxu0 0
        %937 = vmatpush2.bf16.xpose.msra.mxu0 0
        %938 = vmatprep.subr.bf16.mxu0 0
        %939 = vmatpush2.bf16.xpose.msra.mxu0 0
        %940 = vmatprep.subr.bf16.mxu0 0
        %941 = vmatpush2.bf16.xpose.msra.mxu0 0
        %942 = vmatprep.subr.bf16.mxu0 0
        %943 = vmatpush2.bf16.xpose.msra.mxu0 0
        %944 = vmatprep.subr.bf16.mxu0 0
        %945 = vmatpush2.bf16.xpose.msra.mxu0 0
        %946 = vmatprep.mubr.bf16.mxu0 0
        %947 = vmatmul.mubr.bf16.gmra.mxu0 %v909
        %v948 = vpop.f32.mrf.mxu0
        %v949 = vadd.f32 0.0, %v948
        %v950 = vpop.f32.mrf.mxu0
        %v951 = vpop.f32.mrf.mxu0
        %v952 = vpop.f32.mrf.mxu0
        %953 = vdwg.mxu0
        %v954 = vsel %vm795, %v949, -inf
        %955 = vmax.xlane.f32.xlu0 %v954
        %v956 = vpop.xlane.xlu0 %955
        %v957 = vsub.f32 %v949, %v956
        %v958 = vmul.f32 %v957, 1.442695
        %v959 = vpow.pop %v958
        %v960 = vsel %vm795, %v959, 0.0
        %961 = vadd.xlane.f32.xlu0 %v960
        %v962 = vpop.xlane.xlu0 %961
        %v963 = vrcp.pop %v962
        %v964 = vmul.f32 %v959, %v963
        %v965 = vpack.c.bf16 %v964, %v964
        %966 = vrot.lane.b32.xlu0 %v791, 56
        %v967 = vpop.permute.xlu0 %966
        %v969 = vsel %vm795, %v965, 0
        %v972 = vsel %vm859, %v967, 0
        %974 = vmatprep.subr.bf16.mxu0 0
        %975 = vmatpush1.bf16.msra.mxu0 0
        %976 = vmatprep.subr.bf16.mxu0 0
        %977 = vmatpush1.bf16.msra.mxu0 0
        %978 = vmatprep.subr.bf16.mxu0 0
        %979 = vmatpush1.bf16.msra.mxu0 0
        %980 = vmatprep.subr.bf16.mxu0 0
        %981 = vmatpush1.bf16.msra.mxu0 0
        %982 = vmatprep.subr.bf16.mxu0 0
        %983 = vmatpush1.bf16.msra.mxu0 0
        %984 = vmatprep.subr.bf16.mxu0 0
        %985 = vmatpush1.bf16.msra.mxu0 0
        %986 = vmatprep.subr.bf16.mxu0 0
        %987 = vmatpush1.bf16.msra.mxu0 0
        %988 = vmatprep.subr.bf16.mxu0 0
        %989 = vmatpush1.bf16.msra.mxu0 %v972
        %990 = vmatprep.subr.bf16.mxu0 0
        %991 = vmatpush2.bf16.msra.mxu0 0
        %992 = vmatprep.subr.bf16.mxu0 0
        %993 = vmatpush2.bf16.msra.mxu0 0
        %994 = vmatprep.subr.bf16.mxu0 0
        %995 = vmatpush2.bf16.msra.mxu0 0
        %996 = vmatprep.subr.bf16.mxu0 0
        %997 = vmatpush2.bf16.msra.mxu0 0
        %998 = vmatprep.subr.bf16.mxu0 0
        %999 = vmatpush2.bf16.msra.mxu0 0
        %1000 = vmatprep.subr.bf16.mxu0 0
        %1001 = vmatpush2.bf16.msra.mxu0 0
        %1002 = vmatprep.subr.bf16.mxu0 0
        %1003 = vmatpush2.bf16.msra.mxu0 0
        %1004 = vmatprep.subr.bf16.mxu0 0
        %1005 = vmatpush2.bf16.msra.mxu0 0
        %1006 = vmatprep.mubr.bf16.mxu0 0
        %1007 = vmatmul.mubr.bf16.gmra.mxu0 %v969
        %v1008 = vpop.f32.mrf.mxu0
        %v1009 = vadd.f32 0.0, %v1008
        %v1010 = vpop.f32.mrf.mxu0
        %v1011 = vpop.f32.mrf.mxu0
        %v1012 = vpop.f32.mrf.mxu0
        %1013 = vdwg.mxu0
        %v1014 = vpack.c.bf16 %v1009, %v1009
        %v1016 = vsel %vm795, %v1014, 0
        %v1019 = vsel %vm859, %v788, 0
        %1021 = vmatprep.subr.bf16.mxu0 0
        %1022 = vmatpush1.bf16.msra.mxu0 0
        %1023 = vmatprep.subr.bf16.mxu0 0
        %1024 = vmatpush1.bf16.msra.mxu0 0
        %1025 = vmatprep.subr.bf16.mxu0 0
        %1026 = vmatpush1.bf16.msra.mxu0 0
        %1027 = vmatprep.subr.bf16.mxu0 0
        %1028 = vmatpush1.bf16.msra.mxu0 0
        %1029 = vmatprep.subr.bf16.mxu0 0
        %1030 = vmatpush1.bf16.msra.mxu0 0
        %1031 = vmatprep.subr.bf16.mxu0 0
        %1032 = vmatpush1.bf16.msra.mxu0 0
        %1033 = vmatprep.subr.bf16.mxu0 0
        %1034 = vmatpush1.bf16.msra.mxu0 0
        %1035 = vmatprep.subr.bf16.mxu0 0
        %1036 = vmatpush1.bf16.msra.mxu0 %v1019
        %1037 = vmatprep.subr.bf16.mxu0 0
        %1038 = vmatpush2.bf16.msra.mxu0 0
        %1039 = vmatprep.subr.bf16.mxu0 0
        %1040 = vmatpush2.bf16.msra.mxu0 0
        %1041 = vmatprep.subr.bf16.mxu0 0
        %1042 = vmatpush2.bf16.msra.mxu0 0
        %1043 = vmatprep.subr.bf16.mxu0 0
        %1044 = vmatpush2.bf16.msra.mxu0 0
        %1045 = vmatprep.subr.bf16.mxu0 0
        %1046 = vmatpush2.bf16.msra.mxu0 0
        %1047 = vmatprep.subr.bf16.mxu0 0
        %1048 = vmatpush2.bf16.msra.mxu0 0
        %1049 = vmatprep.subr.bf16.mxu0 0
        %1050 = vmatpush2.bf16.msra.mxu0 0
        %1051 = vmatprep.subr.bf16.mxu0 0
        %1052 = vmatpush2.bf16.msra.mxu0 0
        %1053 = vmatprep.mubr.bf16.mxu0 0
        %1054 = vmatmul.mubr.bf16.gmra.mxu0 %v1016
        %v1055 = vpop.f32.mrf.mxu0
        %v1056 = vadd.f32 0.0, %v1055
        %v1057 = vpop.f32.mrf.mxu0
        %v1058 = vpop.f32.mrf.mxu0
        %v1059 = vpop.f32.mrf.mxu0
        %1060 = vdwg.mxu0
        %v1062 = vsel %vm795, %v903, 0
        %v1065 = vsel %vm859, %v787, 0
        %1067 = vmatprep.subr.bf16.mxu0 0
        %1068 = vmatpush1.bf16.msra.mxu0 0
        %1069 = vmatprep.subr.bf16.mxu0 0
        %1070 = vmatpush1.bf16.msra.mxu0 0
        %1071 = vmatprep.subr.bf16.mxu0 0
        %1072 = vmatpush1.bf16.msra.mxu0 0
        %1073 = vmatprep.subr.bf16.mxu0 0
        %1074 = vmatpush1.bf16.msra.mxu0 0
        %1075 = vmatprep.subr.bf16.mxu0 0
        %1076 = vmatpush1.bf16.msra.mxu0 0
        %1077 = vmatprep.subr.bf16.mxu0 0
        %1078 = vmatpush1.bf16.msra.mxu0 0
        %1079 = vmatprep.subr.bf16.mxu0 0
        %1080 = vmatpush1.bf16.msra.mxu0 0
        %1081 = vmatprep.subr.bf16.mxu0 0
        %1082 = vmatpush1.bf16.msra.mxu0 %v1065
        %1083 = vmatprep.subr.bf16.mxu0 0
        %1084 = vmatpush2.bf16.msra.mxu0 0
        %1085 = vmatprep.subr.bf16.mxu0 0
        %1086 = vmatpush2.bf16.msra.mxu0 0
        %1087 = vmatprep.subr.bf16.mxu0 0
        %1088 = vmatpush2.bf16.msra.mxu0 0
        %1089 = vmatprep.subr.bf16.mxu0 0
        %1090 = vmatpush2.bf16.msra.mxu0 0
        %1091 = vmatprep.subr.bf16.mxu0 0
        %1092 = vmatpush2.bf16.msra.mxu0 0
        %1093 = vmatprep.subr.bf16.mxu0 0
        %1094 = vmatpush2.bf16.msra.mxu0 0
        %1095 = vmatprep.subr.bf16.mxu0 0
        %1096 = vmatpush2.bf16.msra.mxu0 0
        %1097 = vmatprep.subr.bf16.mxu0 0
        %1098 = vmatpush2.bf16.msra.mxu0 0
        %1099 = vmatprep.mubr.bf16.mxu0 0
        %1100 = vmatmul.mubr.bf16.gmra.mxu0 %v1062
        %v1101 = vpop.f32.mrf.mxu0
        %v1102 = vadd.f32 %v1056, %v1101
        %v1103 = vpop.f32.mrf.mxu0
        %v1104 = vpop.f32.mrf.mxu0
        %v1105 = vpop.f32.mrf.mxu0
        %1106 = vdwg.mxu0
        %1107 = vrot.lane.b32.xlu0 %v791, 112
        %v1108 = vpop.permute.xlu0 %1107
        %1109 = vrot.lane.b32.xlu0 %v791, 80
        %v1110 = vpop.permute.xlu0 %1109
        %v1112 = vsel %vm795, %v1108, 0
        %v1115 = vsel %vm795, %v1110, 0
        %1117 = vmatprep.subr.bf16.mxu0 0
        %1118 = vmatpush1.bf16.xpose.msra.mxu0 0
        %1119 = vmatprep.subr.bf16.mxu0 0
        %1120 = vmatpush1.bf16.xpose.msra.mxu0 0
        %1121 = vmatprep.subr.bf16.mxu0 0
        %1122 = vmatpush1.bf16.xpose.msra.mxu0 0
        %1123 = vmatprep.subr.bf16.mxu0 0
        %1124 = vmatpush1.bf16.xpose.msra.mxu0 0
        %1125 = vmatprep.subr.bf16.mxu0 0
        %1126 = vmatpush1.bf16.xpose.msra.mxu0 0
        %1127 = vmatprep.subr.bf16.mxu0 0
        %1128 = vmatpush1.bf16.xpose.msra.mxu0 0
        %1129 = vmatprep.subr.bf16.mxu0 0
        %1130 = vmatpush1.bf16.xpose.msra.mxu0 0
        %1131 = vmatprep.subr.bf16.mxu0 0
        %1132 = vmatpush1.bf16.xpose.msra.mxu0 %v1115
        %1133 = vmatprep.subr.bf16.mxu0 0
        %1134 = vmatpush2.bf16.xpose.msra.mxu0 0
        %1135 = vmatprep.subr.bf16.mxu0 0
        %1136 = vmatpush2.bf16.xpose.msra.mxu0 0
        %1137 = vmatprep.subr.bf16.mxu0 0
        %1138 = vmatpush2.bf16.xpose.msra.mxu0 0
        %1139 = vmatprep.subr.bf16.mxu0 0
        %1140 = vmatpush2.bf16.xpose.msra.mxu0 0
        %1141 = vmatprep.subr.bf16.mxu0 0
        %1142 = vmatpush2.bf16.xpose.msra.mxu0 0
        %1143 = vmatprep.subr.bf16.mxu0 0
        %1144 = vmatpush2.bf16.xpose.msra.mxu0 0
        %1145 = vmatprep.subr.bf16.mxu0 0
        %1146 = vmatpush2.bf16.xpose.msra.mxu0 0
        %1147 = vmatprep.subr.bf16.mxu0 0
        %1148 = vmatpush2.bf16.xpose.msra.mxu0 0
        %1149 = vmatprep.mubr.bf16.mxu0 0
        %1150 = vmatmul.mubr.bf16.gmra.mxu0 %v1112
        %v1151 = vpop.f32.mrf.mxu0
        %v1152 = vadd.f32 0.0, %v1151
        %v1153 = vpop.f32.mrf.mxu0
        %v1154 = vpop.f32.mrf.mxu0
        %v1155 = vpop.f32.mrf.mxu0
        %1156 = vdwg.mxu0
        %v1157 = vsel %vm795, %v1152, -inf
        %1158 = vmax.xlane.f32.xlu0 %v1157
        %v1159 = vpop.xlane.xlu0 %1158
        %v1160 = vsub.f32 %v1152, %v1159
        %v1161 = vmul.f32 %v1160, 1.442695
        %v1162 = vpow.pop %v1161
        %v1163 = vsel %vm795, %v1162, 0.0
        %1164 = vadd.xlane.f32.xlu0 %v1163
        %v1165 = vpop.xlane.xlu0 %1164
        %v1166 = vrcp.pop %v1165
        %v1167 = vmul.f32 %v1162, %v1166
        %v1168 = vpack.c.bf16 %v1167, %v1167
        %1169 = vrot.lane.b32.xlu0 %v791, 48
        %v1170 = vpop.permute.xlu0 %1169
        %v1172 = vsel %vm795, %v1168, 0
        %v1175 = vsel %vm859, %v1170, 0
        %1177 = vmatprep.subr.bf16.mxu0 0
        %1178 = vmatpush1.bf16.msra.mxu0 0
        %1179 = vmatprep.subr.bf16.mxu0 0
        %1180 = vmatpush1.bf16.msra.mxu0 0
        %1181 = vmatprep.subr.bf16.mxu0 0
        %1182 = vmatpush1.bf16.msra.mxu0 0
        %1183 = vmatprep.subr.bf16.mxu0 0
        %1184 = vmatpush1.bf16.msra.mxu0 0
        %1185 = vmatprep.subr.bf16.mxu0 0
        %1186 = vmatpush1.bf16.msra.mxu0 0
        %1187 = vmatprep.subr.bf16.mxu0 0
        %1188 = vmatpush1.bf16.msra.mxu0 0
        %1189 = vmatprep.subr.bf16.mxu0 0
        %1190 = vmatpush1.bf16.msra.mxu0 0
        %1191 = vmatprep.subr.bf16.mxu0 0
        %1192 = vmatpush1.bf16.msra.mxu0 %v1175
        %1193 = vmatprep.subr.bf16.mxu0 0
        %1194 = vmatpush2.bf16.msra.mxu0 0
        %1195 = vmatprep.subr.bf16.mxu0 0
        %1196 = vmatpush2.bf16.msra.mxu0 0
        %1197 = vmatprep.subr.bf16.mxu0 0
        %1198 = vmatpush2.bf16.msra.mxu0 0
        %1199 = vmatprep.subr.bf16.mxu0 0
        %1200 = vmatpush2.bf16.msra.mxu0 0
        %1201 = vmatprep.subr.bf16.mxu0 0
        %1202 = vmatpush2.bf16.msra.mxu0 0
        %1203 = vmatprep.subr.bf16.mxu0 0
        %1204 = vmatpush2.bf16.msra.mxu0 0
        %1205 = vmatprep.subr.bf16.mxu0 0
        %1206 = vmatpush2.bf16.msra.mxu0 0
        %1207 = vmatprep.subr.bf16.mxu0 0
        %1208 = vmatpush2.bf16.msra.mxu0 0
        %1209 = vmatprep.mubr.bf16.mxu0 0
        %1210 = vmatmul.mubr.bf16.gmra.mxu0 %v1172
        %v1211 = vpop.f32.mrf.mxu0
        %v1212 = vadd.f32 0.0, %v1211
        %v1213 = vpop.f32.mrf.mxu0
        %v1214 = vpop.f32.mrf.mxu0
        %v1215 = vpop.f32.mrf.mxu0
        %1216 = vdwg.mxu0
        %v1217 = vpack.c.bf16 %v1212, %v1212
        %v1219 = vsel %vm795, %v1217, 0
        %v1222 = vsel %vm859, %v789, 0
        %1224 = vmatprep.subr.bf16.mxu0 0
        %1225 = vmatpush1.bf16.msra.mxu0 0
        %1226 = vmatprep.subr.bf16.mxu0 0
        %1227 = vmatpush1.bf16.msra.mxu0 0
        %1228 = vmatprep.subr.bf16.mxu0 0
        %1229 = vmatpush1.bf16.msra.mxu0 0
        %1230 = vmatprep.subr.bf16.mxu0 0
        %1231 = vmatpush1.bf16.msra.mxu0 0
        %1232 = vmatprep.subr.bf16.mxu0 0
        %1233 = vmatpush1.bf16.msra.mxu0 0
        %1234 = vmatprep.subr.bf16.mxu0 0
        %1235 = vmatpush1.bf16.msra.mxu0 0
        %1236 = vmatprep.subr.bf16.mxu0 0
        %1237 = vmatpush1.bf16.msra.mxu0 0
        %1238 = vmatprep.subr.bf16.mxu0 0
        %1239 = vmatpush1.bf16.msra.mxu0 %v1222
        %1240 = vmatprep.subr.bf16.mxu0 0
        %1241 = vmatpush2.bf16.msra.mxu0 0
        %1242 = vmatprep.subr.bf16.mxu0 0
        %1243 = vmatpush2.bf16.msra.mxu0 0
        %1244 = vmatprep.subr.bf16.mxu0 0
        %1245 = vmatpush2.bf16.msra.mxu0 0
        %1246 = vmatprep.subr.bf16.mxu0 0
        %1247 = vmatpush2.bf16.msra.mxu0 0
        %1248 = vmatprep.subr.bf16.mxu0 0
        %1249 = vmatpush2.bf16.msra.mxu0 0
        %1250 = vmatprep.subr.bf16.mxu0 0
        %1251 = vmatpush2.bf16.msra.mxu0 0
        %1252 = vmatprep.subr.bf16.mxu0 0
        %1253 = vmatpush2.bf16.msra.mxu0 0
        %1254 = vmatprep.subr.bf16.mxu0 0
        %1255 = vmatpush2.bf16.msra.mxu0 0
        %1256 = vmatprep.mubr.bf16.mxu0 0
        %1257 = vmatmul.mubr.bf16.gmra.mxu0 %v1219
        %v1258 = vpop.f32.mrf.mxu0
        %v1259 = vadd.f32 0.0, %v1258
        %v1260 = vpop.f32.mrf.mxu0
        %v1261 = vpop.f32.mrf.mxu0
        %v1262 = vpop.f32.mrf.mxu0
        %1263 = vdwg.mxu0
        %v1264 = vadd.f32 %v1102, %v1259
        %1265 = vrot.lane.b32.xlu0 %v791, 104
        %v1266 = vpop.permute.xlu0 %1265
        %1267 = vrot.lane.b32.xlu0 %v791, 72
        %v1268 = vpop.permute.xlu0 %1267
        %v1270 = vsel %vm795, %v1266, 0
        %v1273 = vsel %vm795, %v1268, 0
        %1275 = vmatprep.subr.bf16.mxu0 0
        %1276 = vmatpush1.bf16.xpose.msra.mxu0 0
        %1277 = vmatprep.subr.bf16.mxu0 0
        %1278 = vmatpush1.bf16.xpose.msra.mxu0 0
        %1279 = vmatprep.subr.bf16.mxu0 0
        %1280 = vmatpush1.bf16.xpose.msra.mxu0 0
        %1281 = vmatprep.subr.bf16.mxu0 0
        %1282 = vmatpush1.bf16.xpose.msra.mxu0 0
        %1283 = vmatprep.subr.bf16.mxu0 0
        %1284 = vmatpush1.bf16.xpose.msra.mxu0 0
        %1285 = vmatprep.subr.bf16.mxu0 0
        %1286 = vmatpush1.bf16.xpose.msra.mxu0 0
        %1287 = vmatprep.subr.bf16.mxu0 0
        %1288 = vmatpush1.bf16.xpose.msra.mxu0 0
        %1289 = vmatprep.subr.bf16.mxu0 0
        %1290 = vmatpush1.bf16.xpose.msra.mxu0 %v1273
        %1291 = vmatprep.subr.bf16.mxu0 0
        %1292 = vmatpush2.bf16.xpose.msra.mxu0 0
        %1293 = vmatprep.subr.bf16.mxu0 0
        %1294 = vmatpush2.bf16.xpose.msra.mxu0 0
        %1295 = vmatprep.subr.bf16.mxu0 0
        %1296 = vmatpush2.bf16.xpose.msra.mxu0 0
        %1297 = vmatprep.subr.bf16.mxu0 0
        %1298 = vmatpush2.bf16.xpose.msra.mxu0 0
        %1299 = vmatprep.subr.bf16.mxu0 0
        %1300 = vmatpush2.bf16.xpose.msra.mxu0 0
        %1301 = vmatprep.subr.bf16.mxu0 0
        %1302 = vmatpush2.bf16.xpose.msra.mxu0 0
        %1303 = vmatprep.subr.bf16.mxu0 0
        %1304 = vmatpush2.bf16.xpose.msra.mxu0 0
        %1305 = vmatprep.subr.bf16.mxu0 0
        %1306 = vmatpush2.bf16.xpose.msra.mxu0 0
        %1307 = vmatprep.mubr.bf16.mxu0 0
        %1308 = vmatmul.mubr.bf16.gmra.mxu0 %v1270
        %v1309 = vpop.f32.mrf.mxu0
        %v1310 = vadd.f32 0.0, %v1309
        %v1311 = vpop.f32.mrf.mxu0
        %v1312 = vpop.f32.mrf.mxu0
        %v1313 = vpop.f32.mrf.mxu0
        %1314 = vdwg.mxu0
        %v1315 = vsel %vm795, %v1310, -inf
        %1316 = vmax.xlane.f32.xlu0 %v1315
        %v1317 = vpop.xlane.xlu0 %1316
        %v1318 = vsub.f32 %v1310, %v1317
        %v1319 = vmul.f32 %v1318, 1.442695
        %v1320 = vpow.pop %v1319
        %v1321 = vsel %vm795, %v1320, 0.0
        %1322 = vadd.xlane.f32.xlu0 %v1321
        %v1323 = vpop.xlane.xlu0 %1322
        %v1324 = vrcp.pop %v1323
        %v1325 = vmul.f32 %v1320, %v1324
        %v1326 = vpack.c.bf16 %v1325, %v1325
        %1327 = vrot.lane.b32.xlu0 %v791, 40
        %v1328 = vpop.permute.xlu0 %1327
        %v1330 = vsel %vm795, %v1326, 0
        %v1333 = vsel %vm859, %v1328, 0
        %1335 = vmatprep.subr.bf16.mxu0 0
        %1336 = vmatpush1.bf16.msra.mxu0 0
        %1337 = vmatprep.subr.bf16.mxu0 0
        %1338 = vmatpush1.bf16.msra.mxu0 0
        %1339 = vmatprep.subr.bf16.mxu0 0
        %1340 = vmatpush1.bf16.msra.mxu0 0
        %1341 = vmatprep.subr.bf16.mxu0 0
        %1342 = vmatpush1.bf16.msra.mxu0 0
        %1343 = vmatprep.subr.bf16.mxu0 0
        %1344 = vmatpush1.bf16.msra.mxu0 0
        %1345 = vmatprep.subr.bf16.mxu0 0
        %1346 = vmatpush1.bf16.msra.mxu0 0
        %1347 = vmatprep.subr.bf16.mxu0 0
        %1348 = vmatpush1.bf16.msra.mxu0 0
        %1349 = vmatprep.subr.bf16.mxu0 0
        %1350 = vmatpush1.bf16.msra.mxu0 %v1333
        %1351 = vmatprep.subr.bf16.mxu0 0
        %1352 = vmatpush2.bf16.msra.mxu0 0
        %1353 = vmatprep.subr.bf16.mxu0 0
        %1354 = vmatpush2.bf16.msra.mxu0 0
        %1355 = vmatprep.subr.bf16.mxu0 0
        %1356 = vmatpush2.bf16.msra.mxu0 0
        %1357 = vmatprep.subr.bf16.mxu0 0
        %1358 = vmatpush2.bf16.msra.mxu0 0
        %1359 = vmatprep.subr.bf16.mxu0 0
        %1360 = vmatpush2.bf16.msra.mxu0 0
        %1361 = vmatprep.subr.bf16.mxu0 0
        %1362 = vmatpush2.bf16.msra.mxu0 0
        %1363 = vmatprep.subr.bf16.mxu0 0
        %1364 = vmatpush2.bf16.msra.mxu0 0
        %1365 = vmatprep.subr.bf16.mxu0 0
        %1366 = vmatpush2.bf16.msra.mxu0 0
        %1367 = vmatprep.mubr.bf16.mxu0 0
        %1368 = vmatmul.mubr.bf16.gmra.mxu0 %v1330
        %v1369 = vpop.f32.mrf.mxu0
        %v1370 = vadd.f32 0.0, %v1369
        %v1371 = vpop.f32.mrf.mxu0
        %v1372 = vpop.f32.mrf.mxu0
        %v1373 = vpop.f32.mrf.mxu0
        %1374 = vdwg.mxu0
        %v1375 = vpack.c.bf16 %v1370, %v1370
        %v1377 = vsel %vm795, %v1375, 0
        %v1380 = vsel %vm859, %v790, 0
        %1382 = vmatprep.subr.bf16.mxu0 0
        %1383 = vmatpush1.bf16.msra.mxu0 0
        %1384 = vmatprep.subr.bf16.mxu0 0
        %1385 = vmatpush1.bf16.msra.mxu0 0
        %1386 = vmatprep.subr.bf16.mxu0 0
        %1387 = vmatpush1.bf16.msra.mxu0 0
        %1388 = vmatprep.subr.bf16.mxu0 0
        %1389 = vmatpush1.bf16.msra.mxu0 0
        %1390 = vmatprep.subr.bf16.mxu0 0
        %1391 = vmatpush1.bf16.msra.mxu0 0
        %1392 = vmatprep.subr.bf16.mxu0 0
        %1393 = vmatpush1.bf16.msra.mxu0 0
        %1394 = vmatprep.subr.bf16.mxu0 0
        %1395 = vmatpush1.bf16.msra.mxu0 0
        %1396 = vmatprep.subr.bf16.mxu0 0
        %1397 = vmatpush1.bf16.msra.mxu0 %v1380
        %1398 = vmatprep.subr.bf16.mxu0 0
        %1399 = vmatpush2.bf16.msra.mxu0 0
        %1400 = vmatprep.subr.bf16.mxu0 0
        %1401 = vmatpush2.bf16.msra.mxu0 0
        %1402 = vmatprep.subr.bf16.mxu0 0
        %1403 = vmatpush2.bf16.msra.mxu0 0
        %1404 = vmatprep.subr.bf16.mxu0 0
        %1405 = vmatpush2.bf16.msra.mxu0 0
        %1406 = vmatprep.subr.bf16.mxu0 0
        %1407 = vmatpush2.bf16.msra.mxu0 0
        %1408 = vmatprep.subr.bf16.mxu0 0
        %1409 = vmatpush2.bf16.msra.mxu0 0
        %1410 = vmatprep.subr.bf16.mxu0 0
        %1411 = vmatpush2.bf16.msra.mxu0 0
        %1412 = vmatprep.subr.bf16.mxu0 0
        %1413 = vmatpush2.bf16.msra.mxu0 0
        %1414 = vmatprep.mubr.bf16.mxu0 0
        %1415 = vmatmul.mubr.bf16.gmra.mxu0 %v1377
        %v1416 = vpop.f32.mrf.mxu0
        %v1417 = vadd.f32 0.0, %v1416
        %v1418 = vpop.f32.mrf.mxu0
        %v1419 = vpop.f32.mrf.mxu0
        %v1420 = vpop.f32.mrf.mxu0
        %1421 = vdwg.mxu0
        %v1422 = vadd.f32 %v1264, %v1417
        %v1423 = vadd.f32 %v688, %v1422
        %v1424 = vld [vmem:[%s657] sm:$0x1]
        %v1426 = vlaneseq
        %v1427 = vshrl.u32 %v1426, 7
        %v1428 = vsub.s32 0, %v1427
        %v1429 = vrot.slane %v1424, %v1428
        %v1431 = vadd.f32 %v1423, %v1429
        %v1432 = vld [vmem:[%s660] sm:$0x1]
        %v1433 = vld [vmem:[%s663] sm:$0x1]
        %v1434 = vsel %vm691, %v1431, 0.0
        %1435 = vadd.xlane.f32.xlu0 %v1434
        %v1436 = vpop.xlane.xlu0 %1435
        %v1437 = vmul.f32 %v1436, %v695
        %v1438 = vsub.f32 %v1431, %v1437
        %v1439 = vmul.f32 %v1438, %v1438
        %v1440 = vsel %vm691, %v1439, 0.0
        %1441 = vadd.xlane.f32.xlu0 %v1440
        %v1442 = vpop.xlane.xlu0 %1441
        %v1443 = vmul.f32 %v1442, %v695
        %v1444 = vadd.f32 %v1443, 1e-05
        %v1445 = vrsqrt.pop %v1444
        %v1446 = vmul.f32 %v1438, %v1445
        %v1448 = vlaneseq
        %v1449 = vshrl.u32 %v1448, 7
        %v1450 = vsub.s32 0, %v1449
        %v1451 = vrot.slane %v1432, %v1450
        %v1453 = vmul.f32 %v1446, %v1451
        %v1455 = vlaneseq
        %v1456 = vshrl.u32 %v1455, 7
        %v1457 = vsub.s32 0, %v1456
        %v1458 = vrot.slane %v1433, %v1457
        %v1460 = vadd.f32 %v1453, %v1458
        %v1461 = vpack.c.bf16 %v1460, %v1460
        %v1462 = vld [vmem:[%s668] sm:$0xf]
        %v1463 = vld [vmem:[%s668 + $0x4] sm:$0xf]
        %v1464 = vld [vmem:[%s668 + $0x8] sm:$0xf]
        %v1465 = vld [vmem:[%s668 + $0xc] sm:$0xf]
        %v1466 = vld [vmem:[%s671] sm:$0x1]
        %v1468 = vlaneseq
        %v1469 = vshrl.u32 %v1468, 7
        %v1470 = vsub.s32 0, %v1469
        %v1471 = vrot.slane %v1466, %v1470
        %v1477 = vunpack.c.l.b16 %v1462
        %v1478 = vunpack.c.l.b16 %v1463
        %v1479 = vunpack.c.l.b16 %v1464
        %v1480 = vunpack.c.l.b16 %v1465
        %v1481 = vpack.c.b16 %v1478, %v1477
        %v1482 = vpack.c.b16 %v1480, %v1479
        %v1486 = vsel %vm691, %v1461, 0
        %1488 = vmatprep.subr.bf16.mxu0 0
        %1489 = vmatpush1.bf16.msra.mxu0 0
        %1490 = vmatprep.subr.bf16.mxu0 0
        %1491 = vmatpush1.bf16.msra.mxu0 0
        %1492 = vmatprep.subr.bf16.mxu0 0
        %1493 = vmatpush1.bf16.msra.mxu0 0
        %1494 = vmatprep.subr.bf16.mxu0 0
        %1495 = vmatpush1.bf16.msra.mxu0 0
        %1496 = vmatprep.subr.bf16.mxu0 0
        %1497 = vmatpush1.bf16.msra.mxu0 0
        %1498 = vmatprep.subr.bf16.mxu0 0
        %1499 = vmatpush1.bf16.msra.mxu0 0
        %1500 = vmatprep.subr.bf16.mxu0 0
        %1501 = vmatpush1.bf16.msra.mxu0 %v1482
        %1502 = vmatprep.subr.bf16.mxu0 0
        %1503 = vmatpush1.bf16.msra.mxu0 %v1481
        %1504 = vmatprep.subr.bf16.mxu0 0
        %1505 = vmatpush2.bf16.msra.mxu0 0
        %1506 = vmatprep.subr.bf16.mxu0 0
        %1507 = vmatpush2.bf16.msra.mxu0 0
        %1508 = vmatprep.subr.bf16.mxu0 0
        %1509 = vmatpush2.bf16.msra.mxu0 0
        %1510 = vmatprep.subr.bf16.mxu0 0
        %1511 = vmatpush2.bf16.msra.mxu0 0
        %1512 = vmatprep.subr.bf16.mxu0 0
        %1513 = vmatpush2.bf16.msra.mxu0 0
        %1514 = vmatprep.subr.bf16.mxu0 0
        %1515 = vmatpush2.bf16.msra.mxu0 0
        %1516 = vmatprep.subr.bf16.mxu0 0
        %1517 = vmatpush2.bf16.msra.mxu0 0
        %1518 = vmatprep.subr.bf16.mxu0 0
        %1519 = vmatpush2.bf16.msra.mxu0 0
        %1520 = vmatprep.mubr.bf16.mxu0 0
        %1521 = vmatmul.mubr.bf16.gmra.mxu0 %v1486
        %v1522 = vpop.f32.mrf.mxu0
        %v1523 = vadd.f32 %v1471, %v1522
        %v1524 = vpop.f32.mrf.mxu0
        %v1525 = vpop.f32.mrf.mxu0
        %v1526 = vpop.f32.mrf.mxu0
        %1527 = vdwg.mxu0
        %v1528 = vmul.f32 %v1523, 0.5
        %v1529 = vmul.f32 %v1523, 0.70710677
        %v1530 = verf.f32.pop %v1529
        %v1531 = vadd.f32 %v1530, 1.0
        %v1532 = vmul.f32 %v1528, %v1531
        %v1533 = vpack.c.bf16 %v1532, %v1532
        %v1534 = vld [vmem:[%s676] sm:$0xf]
        %v1535 = vld [vmem:[%s676 + $0x4] sm:$0xf]
        %v1536 = vld [vmem:[%s676 + $0x8] sm:$0xf]
        %v1537 = vld [vmem:[%s676 + $0xc] sm:$0xf]
        %v1538 = vld [vmem:[%s676 + $0x10] sm:$0xf]
        %v1539 = vld [vmem:[%s676 + $0x14] sm:$0xf]
        %v1540 = vld [vmem:[%s676 + $0x18] sm:$0xf]
        %v1541 = vld [vmem:[%s676 + $0x1c] sm:$0xf]
        %v1542 = vld [vmem:[%s679] sm:$0x1]
        %v1544 = vlaneseq
        %v1545 = vshrl.u32 %v1544, 7
        %v1546 = vsub.s32 0, %v1545
        %v1547 = vrot.slane %v1542, %v1546
        %v1557 = vunpack.c.l.b16 %v1534
        %v1558 = vunpack.c.l.b16 %v1535
        %v1559 = vunpack.c.l.b16 %v1536
        %v1560 = vunpack.c.l.b16 %v1537
        %v1561 = vunpack.c.l.b16 %v1538
        %v1562 = vunpack.c.l.b16 %v1539
        %v1563 = vunpack.c.l.b16 %v1540
        %v1564 = vunpack.c.l.b16 %v1541
        %v1565 = vpack.c.b16 %v1558, %v1557
        %v1566 = vpack.c.b16 %v1560, %v1559
        %v1567 = vpack.c.b16 %v1562, %v1561
        %v1568 = vpack.c.b16 %v1564, %v1563
        %vm1573 = vcmask 523264
        %v1575 = vsel %vm1573, %v1533, 0
        %1577 = vmatprep.subr.bf16.mxu0 0
        %1578 = vmatpush1.bf16.msra.mxu0 0
        %1579 = vmatprep.subr.bf16.mxu0 0
        %1580 = vmatpush1.bf16.msra.mxu0 0
        %1581 = vmatprep.subr.bf16.mxu0 0
        %1582 = vmatpush1.bf16.msra.mxu0 0
        %1583 = vmatprep.subr.bf16.mxu0 0
        %1584 = vmatpush1.bf16.msra.mxu0 0
        %1585 = vmatprep.subr.bf16.mxu0 0
        %1586 = vmatpush1.bf16.msra.mxu0 %v1568
        %1587 = vmatprep.subr.bf16.mxu0 0
        %1588 = vmatpush1.bf16.msra.mxu0 %v1567
        %1589 = vmatprep.subr.bf16.mxu0 0
        %1590 = vmatpush1.bf16.msra.mxu0 %v1566
        %1591 = vmatprep.subr.bf16.mxu0 0
        %1592 = vmatpush1.bf16.msra.mxu0 %v1565
        %1593 = vmatprep.subr.bf16.mxu0 0
        %1594 = vmatpush2.bf16.msra.mxu0 0
        %1595 = vmatprep.subr.bf16.mxu0 0
        %1596 = vmatpush2.bf16.msra.mxu0 0
        %1597 = vmatprep.subr.bf16.mxu0 0
        %1598 = vmatpush2.bf16.msra.mxu0 0
        %1599 = vmatprep.subr.bf16.mxu0 0
        %1600 = vmatpush2.bf16.msra.mxu0 0
        %1601 = vmatprep.subr.bf16.mxu0 0
        %1602 = vmatpush2.bf16.msra.mxu0 0
        %1603 = vmatprep.subr.bf16.mxu0 0
        %1604 = vmatpush2.bf16.msra.mxu0 0
        %1605 = vmatprep.subr.bf16.mxu0 0
        %1606 = vmatpush2.bf16.msra.mxu0 0
        %1607 = vmatprep.subr.bf16.mxu0 0
        %1608 = vmatpush2.bf16.msra.mxu0 0
        %1609 = vmatprep.mubr.bf16.mxu0 0
        %1610 = vmatmul.mubr.bf16.gmra.mxu0 %v1575
        %v1611 = vpop.f32.mrf.mxu0
        %v1612 = vadd.f32 %v1547, %v1611
        %v1613 = vpop.f32.mrf.mxu0
        %v1614 = vpop.f32.mrf.mxu0
        %v1615 = vpop.f32.mrf.mxu0
        %1616 = vdwg.mxu0
        %v1617 = vadd.f32 %v1431, %v1612
        %1618 = vst.msk [vmem:[%s638] sm:$0xff] %vm691, %v1617
        %s1619 = sand.u32 %s391, 1
        %s1620 = scalar_lea.sflag [#allocation4], %s1619
        %s1621 = sand.u32 %s391, 1
        %s1622 = smul.addr %s1621, 8
        %s1623 = scalar_lea.vmem [#allocation7], %s1622
        // Predicated region
        $region85: #{tpu_custom_call.1} parent=71 // pred_check
          %p1624 = pneg %p401
        $region86: #{tpu_custom_call.1} parent=71 // pred_check_branch
          %1626 = sbr.rel (%p1624) target = $region88
        $region87: #{tpu_custom_call.1} parent=71 // pred_region
          %s1628 = ssub.s32 128, 128
          %1629 = vsyncadd %s1620, %s1628
          %s1630 = smul.addr %s37, 128
          %s1631 = scalar_lea.hbm %s13, %s1630
          %s1633 = sshll.u32 %s1623, 4
          %s1634 = int_to_ptr.vmem [resolvable:$true] %s1633
          %1636 = dma.vmem_to_hbm [thread:$0]  %s1634, 128, %s1631, %s1620
        $region88: #{tpu_custom_call.1} parent=71 // pred_fallthru
          _
      $region72: #{tpu_custom_call.1} parent=5 // pred_fallthru
        _
      %p1637 = scmp.le.s32.totalorder 2, %s28
      // Predicated region
      $region89: #{tpu_custom_call.1} parent=5 // pred_check
        %p1638 = pneg %p1637
      $region90: #{tpu_custom_call.1} parent=5 // pred_check_branch
        %1640 = sbr.rel (%p1638) target = $region92
      $region91: #{tpu_custom_call.1} parent=5 // pred_region
        %s1641 = ssub.s32 %s28, 2
        // Predicated region
        $region93: #{tpu_custom_call.1} parent=91 // pred_check
          %p1642 = pneg %p407
        $region94: #{tpu_custom_call.1} parent=91 // pred_check_branch
          %1644 = sbr.rel (%p1642) target = $region96
        $region95: #{tpu_custom_call.1} parent=91 // pred_region
          %s1645 = sand.u32 %s392, 1
          %s1646 = scalar_lea.sflag [#allocation4], %s1645
          %s1647 = sand.u32 %s392, 1
          %s1648 = smul.addr %s1647, 8
          %s1649 = scalar_lea.vmem [#allocation7], %s1648
          %1650 = dma.done %s1646, 128
        $region96: #{tpu_custom_call.1} parent=91 // pred_fallthru
          _
      $region92: #{tpu_custom_call.1} parent=5 // pred_fallthru
        _
    $region6: #{tpu_custom_call.1} parent=1 // loop_footer
      %s32 = sadd.s32 1, %s28
    $region7: #{tpu_custom_call.1} parent=1 // loop_footer_branch
      %27 = sbr.rel target = $region3
    $region8: #{tpu_custom_call.1} parent=1 // loop_exit
      _
    %1651 = vsyncpa [#allocation3], 1
    %s1652 = scalar_lea.sflag [#allocation3], 1
    %1653 = vsyncpa %s1652, 1
    %1654 = vsyncpa [#allocation6], 1
    %s1655 = scalar_lea.sflag [#allocation6], 1
    %1656 = vsyncpa %s1655, 1
    %1657 = vsyncpa [#allocation4], 1
    %s1658 = scalar_lea.sflag [#allocation4], 1
    %1659 = vsyncpa %s1658, 1

</llo_original>
